<compile_context>
chip_gen: v5e
topology: v5e:2x2
jax: 0.10.0
libtpu: 0.0.40
codegen_flags: <defaults>
</compile_context>

<pallas_src>
import functools
import math
from typing import NamedTuple

import jax
import jax.numpy as jnp
from jax import lax
from jax.experimental import pallas as pl
from jax.experimental.pallas import tpu as pltpu

LANE = 128     # lane quantum (last dim)
SUBLANE = 8    # sublane quantum (second-to-last dim)
LN_EPS = 1e-5  # PyTorch LayerNorm default


# ----------------------------- small helpers -----------------------------

def _round_up(x, m):
    return ((x + m - 1) // m) * m


def _pick_tile(dim, cap, quantum):
    """Largest divisor of `dim` that is a multiple of `quantum` and <= cap."""
    assert dim % quantum == 0, (dim, quantum)
    t = max(quantum, min(dim, cap))
    t = (t // quantum) * quantum
    while dim % t:
        t -= quantum
    return t


def _vmem_limit(block_bytes, scratch_bytes=0):
    # double-buffered pipeline blocks + scratch + headroom, capped below the
    # smallest physical VMEM (v7x: 64 MiB per TensorCore).
    return int(min(3 * block_bytes + 2 * scratch_bytes + (4 << 20), 60 << 20))


def _masked_layernorm(y, gamma, beta, n_true, eps):
    """LayerNorm over the first n_true columns of y (remaining cols are pad)."""
    col = lax.broadcasted_iota(jnp.int32, (1, y.shape[-1]), 1)
    mask = col < n_true
    inv_n = 1.0 / float(n_true)
    ym = jnp.where(mask, y, 0.0)
    mean = jnp.sum(ym, axis=-1, keepdims=True) * inv_n
    diff = jnp.where(mask, y - mean, 0.0)
    var = jnp.sum(diff * diff, axis=-1, keepdims=True) * inv_n
    yn = (y - mean) * lax.rsqrt(var + eps)
    return yn * gamma + beta   # padded cols of gamma/beta are zero


# ----------------------------- Pallas kernels -----------------------------

def _linear_kernel(*refs, has_add):
    """Tiled matmul with fused epilogue: y = x @ w + b [+ add]."""
    if has_add:
        x_ref, w_ref, b_ref, add_ref, o_ref, acc_ref = refs
    else:
        x_ref, w_ref, b_ref, o_ref, acc_ref = refs
        add_ref = None

    k = pl.program_id(2)

    @pl.when(k == 0)
    def _():
        acc_ref[...] = jnp.zeros_like(acc_ref)

    acc_ref[...] += jnp.dot(x_ref[...], w_ref[...],
                            preferred_element_type=jnp.float32)

    @pl.when(k == pl.num_programs(2) - 1)
    def _():
        y = acc_ref[...] + b_ref[...]
        if has_add:
            y = y + add_ref[...]
        o_ref[...] = y.astype(o_ref.dtype)


def _attn_block_kernel(q_ref, k_ref, v_ref, ow_ref, ob_ref, res_ref, g_ref,
                       be_ref, o_ref, acc_ref, *, scale, s_true, ln_true_dim,
                       ln_eps):
    """One (batch, head) step of: LN( MHA(x) @ Wo + bo + x ).

    q/k/v refs are [S_p, dh_p] lane-dense per-head blocks; ow_ref is the
    [dh_p, Dp] slice of the out-projection for this head; the head grid axis
    is the reduction axis for the out-projection accumulator."""
    h = pl.program_id(1)

    @pl.when(h == 0)
    def _():
        acc_ref[...] = jnp.zeros_like(acc_ref)

    q = q_ref[...] * scale                       # scale q (S*dh) not scores (S*S)
    # q @ k^T via dot_general contracting on the head dim -> no explicit k.T
    s = lax.dot_general(q, k_ref[...], (((1,), (1,)), ((), ())),
                        preferred_element_type=jnp.float32)
    if s_true < s.shape[-1]:                     # mask padded key positions
        col = lax.broadcasted_iota(jnp.int32, s.shape, 1)
        s = jnp.where(col < s_true, s, -1e30)
    m = jnp.max(s, axis=-1, keepdims=True)
    p = jnp.exp(s - m)
    denom = jnp.sum(p, axis=-1, keepdims=True)
    p = p * pl.reciprocal(denom, approx=True)    # divide on the EUP slot
    o_h = jnp.dot(p, v_ref[...], preferred_element_type=jnp.float32)
    # per-head contribution to the out-projection, accumulated over heads
    acc_ref[...] += jnp.dot(o_h, ow_ref[...], preferred_element_type=jnp.float32)

    @pl.when(h == pl.num_programs(1) - 1)
    def _():
        y = acc_ref[...] + ob_ref[...] + res_ref[...]
        y = _masked_layernorm(y, g_ref[...], be_ref[...], ln_true_dim, ln_eps)
        o_ref[...] = y.astype(o_ref.dtype)


def _ffn_kernel(x_ref, w1_ref, b1_ref, w2_ref, b2_ref, g_ref, be_ref,
                o_ref, acc_ref, *, ln_true_dim, ln_eps):
    """Fused FFN: LN( relu(x@W1+b1)@W2 + b2 + x ), K-grid over dim_feedforward."""
    f = pl.program_id(1)

    @pl.when(f == 0)
    def _():
        acc_ref[...] = jnp.zeros_like(acc_ref)

    h = jnp.dot(x_ref[...], w1_ref[...], preferred_element_type=jnp.float32)
    h = jnp.maximum(h + b1_ref[...], 0.0)
    acc_ref[...] += jnp.dot(h, w2_ref[...], preferred_element_type=jnp.float32)

    @pl.when(f == pl.num_programs(1) - 1)
    def _():
        y = acc_ref[...] + b2_ref[...] + x_ref[...]          # residual = x
        y = _masked_layernorm(y, g_ref[...], be_ref[...], ln_true_dim, ln_eps)
        o_ref[...] = y.astype(o_ref.dtype)


# ----------------------------- kernel wrappers -----------------------------

def fused_linear(x, w, b, *, add=None, tm_cap=256, tn_cap=256, tk_cap=512):
    """out = x @ w + b [+ add]; x:[M,K], w:[K,N], b:[1,N] (all lane-padded)."""
    M, K = x.shape
    K2, N = w.shape
    assert K2 == K and b.shape == (1, N)

    tm = _pick_tile(M, tm_cap, SUBLANE)
    tk = _pick_tile(K, tk_cap, LANE)
    tn = _pick_tile(N, tn_cap, LANE)
    grid = (M // tm, N // tn, K // tk)

    arrays = [x, w, b]
    in_specs = [
        pl.BlockSpec((tm, tk), lambda m, n, k: (m, k)),
        pl.BlockSpec((tk, tn), lambda m, n, k: (k, n)),
        pl.BlockSpec((1, tn), lambda m, n, k: (0, n)),
    ]
    if add is not None:
        arrays.append(add)
        in_specs.append(pl.BlockSpec((tm, tn), lambda m, n, k: (m, n)))

    kernel = functools.partial(_linear_kernel, has_add=add is not None)
    block_elems = (tm * tk + tk * tn + tn + tm * tn
                   + (tm * tn if add is not None else 0))
    return pl.pallas_call(
        kernel,
        out_shape=jax.ShapeDtypeStruct((M, N), x.dtype),
        grid=grid,
        in_specs=in_specs,
        out_specs=pl.BlockSpec((tm, tn), lambda m, n, k: (m, n)),
        scratch_shapes=[pltpu.VMEM((tm, tn), jnp.float32)],
        compiler_params=pltpu.CompilerParams(
            dimension_semantics=("parallel", "parallel", "arbitrary"),
            vmem_limit_bytes=_vmem_limit(4 * block_elems, 4 * tm * tn)),
    )(*arrays)


def fused_attention_block(qkv, x_res, o_w, o_b, gamma, beta, *, nhead,
                          head_dim, head_dim_pad, s_true, d_true):
    """LN( MultiHeadAttention(qkv) @ Wo + bo + x ) in one pallas_call.

    qkv:   [B, S_p, 3*H*dh_p]  (q|k|v, head-major, per-head padded to dh_p)
    x_res: [B*S_p, Dp]         residual stream (updated in place)
    o_w:   [H*dh_p, Dp]  o_b/gamma/beta: [1, Dp]
    """
    B, S_p, C = qkv.shape
    H, dh_p = nhead, head_dim_pad
    assert C == 3 * H * dh_p
    Dp = o_w.shape[1]
    scale = 1.0 / math.sqrt(head_dim)            # TRUE head dim for scaling
    x_res3 = x_res.reshape(B, S_p, Dp)

    def qkv_spec(part):
        return pl.BlockSpec((None, S_p, dh_p),
                            lambda b, h, part=part: (b, 0, part * H + h))

    kernel = functools.partial(_attn_block_kernel, scale=scale, s_true=s_true,
                               ln_true_dim=d_true, ln_eps=LN_EPS)
    block_elems = (3 * S_p * dh_p + dh_p * Dp + 3 * Dp + 2 * S_p * Dp
                   + S_p * S_p)
    out = pl.pallas_call(
        kernel,
        out_shape=jax.ShapeDtypeStruct((B, S_p, Dp), qkv.dtype),
        grid=(B, H),
        in_specs=[qkv_spec(0), qkv_spec(1), qkv_spec(2),
                  pl.BlockSpec((dh_p, Dp), lambda b, h: (h, 0)),    # Wo head rows
                  pl.BlockSpec((1, Dp), lambda b, h: (0, 0)),       # bo
                  pl.BlockSpec((None, S_p, Dp), lambda b, h: (b, 0, 0)),  # residual
                  pl.BlockSpec((1, Dp), lambda b, h: (0, 0)),       # gamma
                  pl.BlockSpec((1, Dp), lambda b, h: (0, 0))],      # beta
        out_specs=pl.BlockSpec((None, S_p, Dp), lambda b, h: (b, 0, 0)),
        scratch_shapes=[pltpu.VMEM((S_p, Dp), jnp.float32)],
        input_output_aliases={5: 0},   # new residual overwrites x in place (P8)
        compiler_params=pltpu.CompilerParams(
            dimension_semantics=("parallel", "arbitrary"),
            vmem_limit_bytes=_vmem_limit(4 * block_elems, 4 * S_p * Dp)),
    )(qkv, qkv, qkv, o_w, o_b, x_res3, gamma, beta)
    return out.reshape(B * S_p, Dp)


def fused_ffn(x, w1, b1, w2, b2, gamma, beta, *, ln_true_dim,
              tm_cap=256, tf_cap=512):
    """LayerNorm( relu(x@W1+b1)@W2 + b2 + x ) in one pallas_call."""
    M, Dp = x.shape
    Dp2, Fp = w1.shape
    assert Dp2 == Dp and w2.shape == (Fp, Dp)
    tm = _pick_tile(M, tm_cap, SUBLANE)
    tf = _pick_tile(Fp, tf_cap, LANE)
    grid = (M // tm, Fp // tf)

    kernel = functools.partial(_ffn_kernel, ln_true_dim=ln_true_dim,
                               ln_eps=LN_EPS)
    in_specs = [
        pl.BlockSpec((tm, Dp), lambda m, f: (m, 0)),   # x (also the residual)
        pl.BlockSpec((Dp, tf), lambda m, f: (0, f)),   # W1 column tile
        pl.BlockSpec((1, tf), lambda m, f: (0, f)),    # b1
        pl.BlockSpec((tf, Dp), lambda m, f: (f, 0)),   # W2 row tile
        pl.BlockSpec((1, Dp), lambda m, f: (0, 0)),    # b2
        pl.BlockSpec((1, Dp), lambda m, f: (0, 0)),    # gamma
        pl.BlockSpec((1, Dp), lambda m, f: (0, 0)),    # beta
    ]
    block_elems = tm * Dp + Dp * tf + tf + tf * Dp + 3 * Dp + tm * Dp + tm * tf
    return pl.pallas_call(
        kernel,
        out_shape=jax.ShapeDtypeStruct((M, Dp), x.dtype),
        grid=grid,
        in_specs=in_specs,
        out_specs=pl.BlockSpec((tm, Dp), lambda m, f: (m, 0)),
        scratch_shapes=[pltpu.VMEM((tm, Dp), jnp.float32)],
        input_output_aliases={0: 0},    # new residual overwrites x in place
        compiler_params=pltpu.CompilerParams(
            dimension_semantics=("parallel", "arbitrary"),
            vmem_limit_bytes=_vmem_limit(4 * block_elems, 4 * tm * Dp)),
    )(x, w1, b1, w2, b2, gamma, beta)


# ----------------------------- parameters / padding -----------------------------

class Config(NamedTuple):
    input_dim: int
    vocab_size: int
    d_model: int
    nhead: int
    dim_feedforward: int


def positional_encoding_table(max_len, d_model):
    pos = jnp.arange(max_len, dtype=jnp.float32)[:, None]
    div = jnp.exp(jnp.arange(0, d_model, 2, dtype=jnp.float32)
                  * (-math.log(10000.0) / d_model))
    ang = pos * div
    pe = jnp.zeros((max_len, d_model), jnp.float32)
    pe = pe.at[:, 0::2].set(jnp.sin(ang))
    pe = pe.at[:, 1::2].set(jnp.cos(ang)[:, :d_model // 2])  # odd-d safe
    return pe


def init_params(key, cfg, num_encoder_layers):
    D, F = cfg.d_model, cfg.dim_feedforward

    def dense(k, fan_in, fan_out):
        kw, kb = jax.random.split(k)
        w = jax.random.normal(kw, (fan_in, fan_out), jnp.float32) / math.sqrt(fan_in)
        b = jax.random.normal(kb, (1, fan_out), jnp.float32) * 0.01
        return w, b

    keys = jax.random.split(key, 2 + num_encoder_layers)
    params = {}
    params["emb_w"], params["emb_b"] = dense(keys[0], cfg.input_dim, D)
    params["out_w"], params["out_b"] = dense(keys[1], D, cfg.vocab_size)
    layers = []
    for li in range(num_encoder_layers):
        lk = jax.random.split(keys[2 + li], 4)
        qkv_w, qkv_b = dense(lk[0], D, 3 * D)
        o_w, o_b = dense(lk[1], D, D)
        ff1_w, ff1_b = dense(lk[2], D, F)
        ff2_w, ff2_b = dense(lk[3], F, D)
        layers.append(dict(
            qkv_w=qkv_w, qkv_b=qkv_b, o_w=o_w, o_b=o_b,
            ff1_w=ff1_w, ff1_b=ff1_b, ff2_w=ff2_w, ff2_b=ff2_b,
            ln1_g=jnp.ones((1, D), jnp.float32), ln1_b=jnp.zeros((1, D), jnp.float32),
            ln2_g=jnp.ones((1, D), jnp.float32), ln2_b=jnp.zeros((1, D), jnp.float32)))
    params["layers"] = layers
    return params


def _pad2(a, rows, cols):
    return jnp.pad(a, ((0, rows - a.shape[0]), (0, cols - a.shape[1])))


def pad_params(params, cfg):
    """Zero-pad weights to lane-dense (multiple-of-128) layouts.

    QKV weights are laid out head-major with every head padded to dh_p lanes,
    and the out-projection rows match, so the attention kernel slices heads
    via BlockSpec column/row blocks (no host-side split / transpose)."""
    D, H = cfg.d_model, cfg.nhead
    dh = D // H
    In_p = _round_up(cfg.input_dim, LANE)
    Dp = _round_up(D, LANE)
    Fp = _round_up(cfg.dim_feedforward, LANE)
    Vp = _round_up(cfg.vocab_size, LANE)
    dh_p = _round_up(dh, LANE)

    out = {
        "emb_w": _pad2(params["emb_w"], In_p, Dp),
        "emb_b": _pad2(params["emb_b"], 1, Dp),
        "out_w": _pad2(params["out_w"], Dp, Vp),
        "out_b": _pad2(params["out_b"], 1, Vp),
        "layers": [],
    }
    for lp in params["layers"]:
        w_blocks, b_blocks = [], []
        for part in range(3):                                  # q, k, v
            pw = lp["qkv_w"][:, part * D:(part + 1) * D]
            pb = lp["qkv_b"][:, part * D:(part + 1) * D]
            for h in range(H):
                w_blocks.append(_pad2(pw[:, h * dh:(h + 1) * dh], Dp, dh_p))
                b_blocks.append(_pad2(pb[:, h * dh:(h + 1) * dh], 1, dh_p))
        o_rows = [_pad2(lp["o_w"][h * dh:(h + 1) * dh, :], dh_p, Dp)
                  for h in range(H)]
        out["layers"].append(dict(
            qkv_w=jnp.concatenate(w_blocks, axis=1),           # [Dp, 3*H*dh_p]
            qkv_b=jnp.concatenate(b_blocks, axis=1),           # [1, 3*H*dh_p]
            o_w=jnp.concatenate(o_rows, axis=0),               # [H*dh_p, Dp]
            o_b=_pad2(lp["o_b"], 1, Dp),
            ff1_w=_pad2(lp["ff1_w"], Dp, Fp), ff1_b=_pad2(lp["ff1_b"], 1, Fp),
            ff2_w=_pad2(lp["ff2_w"], Fp, Dp), ff2_b=_pad2(lp["ff2_b"], 1, Dp),
            ln1_g=_pad2(lp["ln1_g"], 1, Dp), ln1_b=_pad2(lp["ln1_b"], 1, Dp),
            ln2_g=_pad2(lp["ln2_g"], 1, Dp), ln2_b=_pad2(lp["ln2_b"], 1, Dp)))
    return out


# ----------------------------- forward -----------------------------

@functools.partial(jax.jit, static_argnames=("cfg",))
def transformer_ctc_forward(padded_params, src, *, cfg):
    """src: [B, S, input_dim] -> logits [B, S, vocab_size] (no log_softmax,
    matching the PyTorch forward)."""
    B, S, Fin = src.shape
    D, H = cfg.d_model, cfg.nhead
    dh = D // H
    In_p = _round_up(Fin, LANE)
    Dp = _round_up(D, LANE)
    dh_p = _round_up(dh, LANE)
    Vp = _round_up(cfg.vocab_size, LANE)
    S_p = _round_up(S, SUBLANE)
    M = B * S_p

    # pad rows per batch and feature lanes; flatten to [B*S_p, In_p]
    src_p = jnp.pad(src, ((0, 0), (0, S_p - S), (0, In_p - Fin))).reshape(M, In_p)

    # positional encoding (dropout = identity in eval), fused into the
    # embedding matmul's epilogue
    pe = positional_encoding_table(S, D)
    pe = jnp.pad(pe, ((0, S_p - S), (0, Dp - D)))
    pe = jnp.broadcast_to(pe[None], (B, S_p, Dp)).reshape(M, Dp)

    # encoder_embedding + positional encoding
    x = fused_linear(src_p, padded_params["emb_w"], padded_params["emb_b"],
                     add=pe)

    # nn.TransformerEncoder: post-norm layers, ReLU FFN, dropout = identity
    for lp in padded_params["layers"]:
        # ---- fused QKV projection ----
        qkv = fused_linear(x, lp["qkv_w"], lp["qkv_b"])          # [M, 3*H*dh_p]
        # ---- MHA + out_proj + residual + LayerNorm (single pallas_call) ----
        x = fused_attention_block(qkv.reshape(B, S_p, 3 * H * dh_p), x,
                                  lp["o_w"], lp["o_b"], lp["ln1_g"], lp["ln1_b"],
                                  nhead=H, head_dim=dh, head_dim_pad=dh_p,
                                  s_true=S, d_true=D)
        # ---- feed-forward + residual + LayerNorm (single pallas_call) ----
        x = fused_ffn(x, lp["ff1_w"], lp["ff1_b"], lp["ff2_w"], lp["ff2_b"],
                      lp["ln2_g"], lp["ln2_b"], ln_true_dim=D)

    # fc_out, then strip padding
    logits = fused_linear(x, padded_params["out_w"], padded_params["out_b"])
    return logits.reshape(B, S_p, Vp)[:, :S, :cfg.vocab_size]


# ----------------------------- main -----------------------------

if __name__ == "__main__":
    B, S = 2, 8
    cfg = Config(input_dim=16, vocab_size=20, d_model=32, nhead=4,
                 dim_feedforward=64)
    num_layers = 2

    key = jax.random.PRNGKey(0)
    pkey, xkey = jax.random.split(key)
    params = init_params(pkey, cfg, num_layers)
    params_p = pad_params(params, cfg)
    src = jax.random.normal(xkey, (B, S, cfg.input_dim), jnp.float32)

    out = transformer_ctc_forward(params_p, src, cfg=cfg)
    out = jax.block_until_ready(out)
    assert out.shape == (B, S, cfg.vocab_size), out.shape
    assert bool(jnp.all(jnp.isfinite(out)))
    # TODO(synk): dropout layers are identity (eval mode); greedy_decoder /
    # log_softmax are not part of the module's forward().
    print("KERNEL_OK")
</pallas_src>

<mosaic_0001>
module attributes {stable_mosaic.version = 11 : i64} {
  func.func @_linear_kernel(%arg0: i32, %arg1: i32, %arg2: i32, %arg3: memref<16x128xf32, #tpu.memory_space<vmem>>, %arg4: memref<128x256xf32, #tpu.memory_space<vmem>>, %arg5: memref<1x256xf32, #tpu.memory_space<vmem>>, %arg6: memref<16x256xf32, #tpu.memory_space<vmem>>, %arg7: memref<16x256xf32, #tpu.memory_space<vmem>>) attributes {dimension_semantics = [#tpu.dimension_semantics<parallel>, #tpu.dimension_semantics<parallel>, #tpu.dimension_semantics<arbitrary>], iteration_bounds = array<i64: 1, 6, 1>, scalar_prefetch = 0 : i64, scratch_operands = 1 : i64, tpu.core_type = #tpu.core_type<tc>, window_params = [{transform_indices = @transform_0, window_bounds = array<i64: 16, 128>}, {transform_indices = @transform_1, window_bounds = array<i64: 128, 256>}, {transform_indices = @transform_2, window_bounds = array<i64: 1, 256>}, {transform_indices = @transform_3, window_bounds = array<i64: 16, 256>}]} {
    %c0_i32 = arith.constant 0 : i32
    %0 = arith.cmpi eq, %arg2, %c0_i32 : i32
    %1 = arith.extui %0 : i1 to i32
    %c0_i32_0 = arith.constant 0 : i32
    %2 = arith.cmpi ne, %1, %c0_i32_0 : i32
    scf.if %2 {
      %cst_10 = arith.constant 0.000000e+00 : f32
      %12 = vector.broadcast %cst_10 : f32 to vector<16x256xf32>
      %c0_11 = arith.constant 0 : index
      %c0_12 = arith.constant 0 : index
      %13 = vector.load %arg7[%c0_11, %c0_12] : memref<16x256xf32, #tpu.memory_space<vmem>>, vector<16x256xf32>
      tpu.vector_store %arg7[%c0_11, %c0_12], %12 {strides = array<i32>} : memref<16x256xf32, #tpu.memory_space<vmem>>, vector<16x256xf32>,
    } else {
    }
    %c0 = arith.constant 0 : index
    %c0_1 = arith.constant 0 : index
    %3 = vector.load %arg7[%c0, %c0_1] : memref<16x256xf32, #tpu.memory_space<vmem>>, vector<16x256xf32>
    %c0_2 = arith.constant 0 : index
    %c0_3 = arith.constant 0 : index
    %4 = vector.load %arg3[%c0_2, %c0_3] : memref<16x128xf32, #tpu.memory_space<vmem>>, vector<16x128xf32>
    %c0_4 = arith.constant 0 : index
    %c0_5 = arith.constant 0 : index
    %5 = vector.load %arg4[%c0_4, %c0_5] : memref<128x256xf32, #tpu.memory_space<vmem>>, vector<128x256xf32>
    %cst = arith.constant dense<0.000000e+00> : vector<16x256xf32>
    %6 = tpu.matmul %4, %5, %cst {dimension_numbers = #tpu.dot_dimension_numbers<[1], [0], [0], [1], [0, 0, 1, 1], [], []>} : vector<16x128xf32>, vector<128x256xf32>, vector<16x256xf32> -> vector<16x256xf32>
    %7 = arith.addf %3, %6 : vector<16x256xf32>
    %c0_6 = arith.constant 0 : index
    %c0_7 = arith.constant 0 : index
    %8 = vector.load %arg7[%c0_6, %c0_7] : memref<16x256xf32, #tpu.memory_space<vmem>>, vector<16x256xf32>
    tpu.vector_store %arg7[%c0_6, %c0_7], %7 {strides = array<i32>} : memref<16x256xf32, #tpu.memory_space<vmem>>, vector<16x256xf32>,
    %c0_i32_8 = arith.constant 0 : i32
    %9 = arith.cmpi eq, %arg2, %c0_i32_8 : i32
    %10 = arith.extui %9 : i1 to i32
    %c0_i32_9 = arith.constant 0 : i32
    %11 = arith.cmpi ne, %10, %c0_i32_9 : i32
    scf.if %11 {
      %c0_10 = arith.constant 0 : index
      %c0_11 = arith.constant 0 : index
      %12 = vector.load %arg7[%c0_10, %c0_11] : memref<16x256xf32, #tpu.memory_space<vmem>>, vector<16x256xf32>
      %c0_12 = arith.constant 0 : index
      %c0_13 = arith.constant 0 : index
      %13 = vector.load %arg5[%c0_12, %c0_13] : memref<1x256xf32, #tpu.memory_space<vmem>>, vector<1x256xf32>
      %14 = vector.broadcast %13 : vector<1x256xf32> to vector<16x256xf32>
      %15 = arith.addf %12, %14 : vector<16x256xf32>
      %c0_14 = arith.constant 0 : index
      %c0_15 = arith.constant 0 : index
      %16 = vector.load %arg6[%c0_14, %c0_15] : memref<16x256xf32, #tpu.memory_space<vmem>>, vector<16x256xf32>
      tpu.vector_store %arg6[%c0_14, %c0_15], %15 {strides = array<i32>} : memref<16x256xf32, #tpu.memory_space<vmem>>, vector<16x256xf32>,
    } else {
    }
    return
  }
  func.func @transform_0(%arg0: i32, %arg1: i32, %arg2: i32) -> (i32, i32) {
    %c0_i32 = arith.constant 0 : i32
    return %arg0, %arg2 : i32, i32
  }
  func.func @transform_1(%arg0: i32, %arg1: i32, %arg2: i32) -> (i32, i32) {
    %c0_i32 = arith.constant 0 : i32
    return %arg2, %arg1 : i32, i32
  }
  func.func @transform_2(%arg0: i32, %arg1: i32, %arg2: i32) -> (i32, i32) {
    %c0_i32 = arith.constant 0 : i32
    %c0_i32_0 = arith.constant 0 : i32
    return %c0_i32, %arg1 : i32, i32
  }
  func.func @transform_3(%arg0: i32, %arg1: i32, %arg2: i32) -> (i32, i32) {
    %c0_i32 = arith.constant 0 : i32
    return %arg0, %arg1 : i32, i32
  }
}

module attributes {stable_mosaic.version = 11 : i64} {
  func.func @_linear_kernel(%arg0: i32, %arg1: i32, %arg2: i32, %arg3: memref<16x128xf32, #tpu.memory_space<vmem>>, %arg4: memref<128x128xf32, #tpu.memory_space<vmem>>, %arg5: memref<1x128xf32, #tpu.memory_space<vmem>>, %arg6: memref<16x128xf32, #tpu.memory_space<vmem>>, %arg7: memref<16x128xf32, #tpu.memory_space<vmem>>, %arg8: memref<16x128xf32, #tpu.memory_space<vmem>>) attributes {dimension_semantics = [#tpu.dimension_semantics<parallel>, #tpu.dimension_semantics<parallel>, #tpu.dimension_semantics<arbitrary>], iteration_bounds = array<i64: 1, 1, 1>, scalar_prefetch = 0 : i64, scratch_operands = 1 : i64, tpu.core_type = #tpu.core_type<tc>, window_params = [{transform_indices = @transform_0, window_bounds = array<i64: 16, 128>}, {transform_indices = @transform_1, window_bounds = array<i64: 128, 128>}, {transform_indices = @transform_2, window_bounds = array<i64: 1, 128>}, {transform_indices = @transform_3, window_bounds = array<i64: 16, 128>}, {transform_indices = @transform_4, window_bounds = array<i64: 16, 128>}]} {
    %c0_i32 = arith.constant 0 : i32
    %0 = arith.cmpi eq, %arg2, %c0_i32 : i32
    %1 = arith.extui %0 : i1 to i32
    %c0_i32_0 = arith.constant 0 : i32
    %2 = arith.cmpi ne, %1, %c0_i32_0 : i32
    scf.if %2 {
      %cst_10 = arith.constant 0.000000e+00 : f32
      %12 = vector.broadcast %cst_10 : f32 to vector<16x128xf32>
      %c0_11 = arith.constant 0 : index
      %c0_12 = arith.constant 0 : index
      %13 = vector.load %arg8[%c0_11, %c0_12] : memref<16x128xf32, #tpu.memory_space<vmem>>, vector<16x128xf32>
      tpu.vector_store %arg8[%c0_11, %c0_12], %12 {strides = array<i32>} : memref<16x128xf32, #tpu.memory_space<vmem>>, vector<16x128xf32>,
    } else {
    }
    %c0 = arith.constant 0 : index
    %c0_1 = arith.constant 0 : index
    %3 = vector.load %arg8[%c0, %c0_1] : memref<16x128xf32, #tpu.memory_space<vmem>>, vector<16x128xf32>
    %c0_2 = arith.constant 0 : index
    %c0_3 = arith.constant 0 : index
    %4 = vector.load %arg3[%c0_2, %c0_3] : memref<16x128xf32, #tpu.memory_space<vmem>>, vector<16x128xf32>
    %c0_4 = arith.constant 0 : index
    %c0_5 = arith.constant 0 : index
    %5 = vector.load %arg4[%c0_4, %c0_5] : memref<128x128xf32, #tpu.memory_space<vmem>>, vector<128x128xf32>
    %cst = arith.constant dense<0.000000e+00> : vector<16x128xf32>
    %6 = tpu.matmul %4, %5, %cst {dimension_numbers = #tpu.dot_dimension_numbers<[1], [0], [0], [1], [0, 0, 1, 1], [], []>} : vector<16x128xf32>, vector<128x128xf32>, vector<16x128xf32> -> vector<16x128xf32>
    %7 = arith.addf %3, %6 : vector<16x128xf32>
    %c0_6 = arith.constant 0 : index
    %c0_7 = arith.constant 0 : index
    %8 = vector.load %arg8[%c0_6, %c0_7] : memref<16x128xf32, #tpu.memory_space<vmem>>, vector<16x128xf32>
    tpu.vector_store %arg8[%c0_6, %c0_7], %7 {strides = array<i32>} : memref<16x128xf32, #tpu.memory_space<vmem>>, vector<16x128xf32>,
    %c0_i32_8 = arith.constant 0 : i32
    %9 = arith.cmpi eq, %arg2, %c0_i32_8 : i32
    %10 = arith.extui %9 : i1 to i32
    %c0_i32_9 = arith.constant 0 : i32
    %11 = arith.cmpi ne, %10, %c0_i32_9 : i32
    scf.if %11 {
      %c0_10 = arith.constant 0 : index
      %c0_11 = arith.constant 0 : index
      %12 = vector.load %arg8[%c0_10, %c0_11] : memref<16x128xf32, #tpu.memory_space<vmem>>, vector<16x128xf32>
      %c0_12 = arith.constant 0 : index
      %c0_13 = arith.constant 0 : index
      %13 = vector.load %arg5[%c0_12, %c0_13] : memref<1x128xf32, #tpu.memory_space<vmem>>, vector<1x128xf32>
      %14 = vector.broadcast %13 : vector<1x128xf32> to vector<16x128xf32>
      %15 = arith.addf %12, %14 : vector<16x128xf32>
      %c0_14 = arith.constant 0 : index
      %c0_15 = arith.constant 0 : index
      %16 = vector.load %arg6[%c0_14, %c0_15] : memref<16x128xf32, #tpu.memory_space<vmem>>, vector<16x128xf32>
      %17 = arith.addf %15, %16 : vector<16x128xf32>
      %c0_16 = arith.constant 0 : index
      %c0_17 = arith.constant 0 : index
      %18 = vector.load %arg7[%c0_16, %c0_17] : memref<16x128xf32, #tpu.memory_space<vmem>>, vector<16x128xf32>
      tpu.vector_store %arg7[%c0_16, %c0_17], %17 {strides = array<i32>} : memref<16x128xf32, #tpu.memory_space<vmem>>, vector<16x128xf32>,
    } else {
    }
    return
  }
  func.func @transform_0(%arg0: i32, %arg1: i32, %arg2: i32) -> (i32, i32) {
    %c0_i32 = arith.constant 0 : i32
    return %arg0, %arg2 : i32, i32
  }
  func.func @transform_1(%arg0: i32, %arg1: i32, %arg2: i32) -> (i32, i32) {
    %c0_i32 = arith.constant 0 : i32
    return %arg2, %arg1 : i32, i32
  }
  func.func @transform_2(%arg0: i32, %arg1: i32, %arg2: i32) -> (i32, i32) {
    %c0_i32 = arith.constant 0 : i32
    %c0_i32_0 = arith.constant 0 : i32
    return %c0_i32, %arg1 : i32, i32
  }
  func.func @transform_3(%arg0: i32, %arg1: i32, %arg2: i32) -> (i32, i32) {
    %c0_i32 = arith.constant 0 : i32
    return %arg0, %arg1 : i32, i32
  }
  func.func @transform_4(%arg0: i32, %arg1: i32, %arg2: i32) -> (i32, i32) {
    %c0_i32 = arith.constant 0 : i32
    return %arg0, %arg1 : i32, i32
  }
}

module attributes {stable_mosaic.version = 11 : i64} {
  func.func @_ffn_kernel(%arg0: i32, %arg1: i32, %arg2: memref<16x128xf32, #tpu.memory_space<vmem>>, %arg3: memref<128x128xf32, #tpu.memory_space<vmem>>, %arg4: memref<1x128xf32, #tpu.memory_space<vmem>>, %arg5: memref<128x128xf32, #tpu.memory_space<vmem>>, %arg6: memref<1x128xf32, #tpu.memory_space<vmem>>, %arg7: memref<1x128xf32, #tpu.memory_space<vmem>>, %arg8: memref<1x128xf32, #tpu.memory_space<vmem>>, %arg9: memref<16x128xf32, #tpu.memory_space<vmem>>, %arg10: memref<16x128xf32, #tpu.memory_space<vmem>>) attributes {dimension_semantics = [#tpu.dimension_semantics<parallel>, #tpu.dimension_semantics<arbitrary>], iteration_bounds = array<i64: 1, 1>, scalar_prefetch = 0 : i64, scratch_operands = 1 : i64, tpu.core_type = #tpu.core_type<tc>, window_params = [{transform_indices = @transform_0, window_bounds = array<i64: 16, 128>}, {transform_indices = @transform_1, window_bounds = array<i64: 128, 128>}, {transform_indices = @transform_2, window_bounds = array<i64: 1, 128>}, {transform_indices = @transform_3, window_bounds = array<i64: 128, 128>}, {pipeline_mode = #tpu.pipeline_mode<synchronous>, transform_indices = @transform_4, window_bounds = array<i64: 1, 128>}, {pipeline_mode = #tpu.pipeline_mode<synchronous>, transform_indices = @transform_5, window_bounds = array<i64: 1, 128>}, {pipeline_mode = #tpu.pipeline_mode<synchronous>, transform_indices = @transform_6, window_bounds = array<i64: 1, 128>}, {transform_indices = @transform_7, window_bounds = array<i64: 16, 128>}]} {
    %c0_i32 = arith.constant 0 : i32
    %0 = arith.cmpi eq, %arg1, %c0_i32 : i32
    %1 = arith.extui %0 : i1 to i32
    %c0_i32_0 = arith.constant 0 : i32
    %2 = arith.cmpi ne, %1, %c0_i32_0 : i32
    scf.if %2 {
      %cst_16 = arith.constant 0.000000e+00 : f32
      %19 = vector.broadcast %cst_16 : f32 to vector<16x128xf32>
      %c0_17 = arith.constant 0 : index
      %c0_18 = arith.constant 0 : index
      %20 = vector.load %arg10[%c0_17, %c0_18] : memref<16x128xf32, #tpu.memory_space<vmem>>, vector<16x128xf32>
      tpu.vector_store %arg10[%c0_17, %c0_18], %19 {strides = array<i32>} : memref<16x128xf32, #tpu.memory_space<vmem>>, vector<16x128xf32>,
    } else {
    }
    %c0 = arith.constant 0 : index
    %c0_1 = arith.constant 0 : index
    %3 = vector.load %arg2[%c0, %c0_1] : memref<16x128xf32, #tpu.memory_space<vmem>>, vector<16x128xf32>
    %c0_2 = arith.constant 0 : index
    %c0_3 = arith.constant 0 : index
    %4 = vector.load %arg3[%c0_2, %c0_3] : memref<128x128xf32, #tpu.memory_space<vmem>>, vector<128x128xf32>
    %cst = arith.constant dense<0.000000e+00> : vector<16x128xf32>
    %5 = tpu.matmul %3, %4, %cst {dimension_numbers = #tpu.dot_dimension_numbers<[1], [0], [0], [1], [0, 0, 1, 1], [], []>} : vector<16x128xf32>, vector<128x128xf32>, vector<16x128xf32> -> vector<16x128xf32>
    %c0_4 = arith.constant 0 : index
    %c0_5 = arith.constant 0 : index
    %6 = vector.load %arg4[%c0_4, %c0_5] : memref<1x128xf32, #tpu.memory_space<vmem>>, vector<1x128xf32>
    %7 = vector.broadcast %6 : vector<1x128xf32> to vector<16x128xf32>
    %8 = arith.addf %5, %7 : vector<16x128xf32>
    %cst_6 = arith.constant 0.000000e+00 : f32
    %9 = vector.broadcast %cst_6 : f32 to vector<16x128xf32>
    %10 = arith.maximumf %8, %9 : vector<16x128xf32>
    %c0_7 = arith.constant 0 : index
    %c0_8 = arith.constant 0 : index
    %11 = vector.load %arg10[%c0_7, %c0_8] : memref<16x128xf32, #tpu.memory_space<vmem>>, vector<16x128xf32>
    %c0_9 = arith.constant 0 : index
    %c0_10 = arith.constant 0 : index
    %12 = vector.load %arg5[%c0_9, %c0_10] : memref<128x128xf32, #tpu.memory_space<vmem>>, vector<128x128xf32>
    %cst_11 = arith.constant dense<0.000000e+00> : vector<16x128xf32>
    %13 = tpu.matmul %10, %12, %cst_11 {dimension_numbers = #tpu.dot_dimension_numbers<[1], [0], [0], [1], [0, 0, 1, 1], [], []>} : vector<16x128xf32>, vector<128x128xf32>, vector<16x128xf32> -> vector<16x128xf32>
    %14 = arith.addf %11, %13 : vector<16x128xf32>
    %c0_12 = arith.constant 0 : index
    %c0_13 = arith.constant 0 : index
    %15 = vector.load %arg10[%c0_12, %c0_13] : memref<16x128xf32, #tpu.memory_space<vmem>>, vector<16x128xf32>
    tpu.vector_store %arg10[%c0_12, %c0_13], %14 {strides = array<i32>} : memref<16x128xf32, #tpu.memory_space<vmem>>, vector<16x128xf32>,
    %c0_i32_14 = arith.constant 0 : i32
    %16 = arith.cmpi eq, %arg1, %c0_i32_14 : i32
    %17 = arith.extui %16 : i1 to i32
    %c0_i32_15 = arith.constant 0 : i32
    %18 = arith.cmpi ne, %17, %c0_i32_15 : i32
    scf.if %18 {
      %c0_16 = arith.constant 0 : index
      %c0_17 = arith.constant 0 : index
      %19 = vector.load %arg10[%c0_16, %c0_17] : memref<16x128xf32, #tpu.memory_space<vmem>>, vector<16x128xf32>
      %c0_18 = arith.constant 0 : index
      %c0_19 = arith.constant 0 : index
      %20 = vector.load %arg6[%c0_18, %c0_19] : memref<1x128xf32, #tpu.memory_space<vmem>>, vector<1x128xf32>
      %21 = vector.broadcast %20 : vector<1x128xf32> to vector<16x128xf32>
      %22 = arith.addf %19, %21 : vector<16x128xf32>
      %c0_20 = arith.constant 0 : index
      %c0_21 = arith.constant 0 : index
      %23 = vector.load %arg2[%c0_20, %c0_21] : memref<16x128xf32, #tpu.memory_space<vmem>>, vector<16x128xf32>
      %24 = arith.addf %22, %23 : vector<16x128xf32>
      %c0_22 = arith.constant 0 : index
      %c0_23 = arith.constant 0 : index
      %25 = vector.load %arg7[%c0_22, %c0_23] : memref<1x128xf32, #tpu.memory_space<vmem>>, vector<1x128xf32>
      %c0_24 = arith.constant 0 : index
      %c0_25 = arith.constant 0 : index
      %26 = vector.load %arg8[%c0_24, %c0_25] : memref<1x128xf32, #tpu.memory_space<vmem>>, vector<1x128xf32>
      %27 = tpu.iota {dimensions = array<i32: 1>} : vector<1x128xi32>
      %c32_i32 = arith.constant 32 : i32
      %28 = vector.broadcast %c32_i32 : i32 to vector<1x128xi32>
      %29 = arith.cmpi slt, %27, %28 : vector<1x128xi32>
      %cst_26 = arith.constant 0.000000e+00 : f32
      %30 = vector.shape_cast %29 : vector<1x128xi1> to vector<1x128xi1>
      %31 = vector.broadcast %30 : vector<1x128xi1> to vector<16x128xi1>
      %32 = vector.broadcast %cst_26 : f32 to vector<16x128xf32>
      %33 = arith.select %31, %24, %32 : vector<16x128xi1>, vector<16x128xf32>
      %cst_27 = arith.constant dense<0.000000e+00> : vector<16xf32>
      %34 = vector.multi_reduction <add>, %33, %cst_27 [1] : vector<16x128xf32> to vector<16xf32>
      %35 = vector.shape_cast %34 : vector<16xf32> to vector<16x1xf32>
      %cst_28 = arith.constant 3.125000e-02 : f32
      %36 = vector.broadcast %cst_28 : f32 to vector<16x1xf32>
      %37 = arith.mulf %35, %36 : vector<16x1xf32>
      %38 = vector.broadcast %37 : vector<16x1xf32> to vector<16x128xf32>
      %39 = arith.subf %24, %38 : vector<16x128xf32>
      %cst_29 = arith.constant 0.000000e+00 : f32
      %40 = vector.shape_cast %29 : vector<1x128xi1> to vector<1x128xi1>
      %41 = vector.broadcast %40 : vector<1x128xi1> to vector<16x128xi1>
      %42 = vector.broadcast %cst_29 : f32 to vector<16x128xf32>
      %43 = arith.select %41, %39, %42 : vector<16x128xi1>, vector<16x128xf32>
      %44 = arith.mulf %43, %43 : vector<16x128xf32>
      %cst_30 = arith.constant dense<0.000000e+00> : vector<16xf32>
      %45 = vector.multi_reduction <add>, %44, %cst_30 [1] : vector<16x128xf32> to vector<16xf32>
      %46 = vector.shape_cast %45 : vector<16xf32> to vector<16x1xf32>
      %cst_31 = arith.constant 3.125000e-02 : f32
      %47 = vector.broadcast %cst_31 : f32 to vector<16x1xf32>
      %48 = arith.mulf %46, %47 : vector<16x1xf32>
      %49 = vector.broadcast %37 : vector<16x1xf32> to vector<16x128xf32>
      %50 = arith.subf %24, %49 : vector<16x128xf32>
      %cst_32 = arith.constant 9.99999974E-6 : f32
      %51 = vector.broadcast %cst_32 : f32 to vector<16x1xf32>
      %52 = arith.addf %48, %51 : vector<16x1xf32>
      %53 = math.rsqrt %52 : vector<16x1xf32>
      %54 = vector.broadcast %53 : vector<16x1xf32> to vector<16x128xf32>
      %55 = arith.mulf %50, %54 : vector<16x128xf32>
      %56 = vector.broadcast %25 : vector<1x128xf32> to vector<16x128xf32>
      %57 = arith.mulf %55, %56 : vector<16x128xf32>
      %58 = vector.broadcast %26 : vector<1x128xf32> to vector<16x128xf32>
      %59 = arith.addf %57, %58 : vector<16x128xf32>
      %c0_33 = arith.constant 0 : index
      %c0_34 = arith.constant 0 : index
      %60 = vector.load %arg9[%c0_33, %c0_34] : memref<16x128xf32, #tpu.memory_space<vmem>>, vector<16x128xf32>
      tpu.vector_store %arg9[%c0_33, %c0_34], %59 {strides = array<i32>} : memref<16x128xf32, #tpu.memory_space<vmem>>, vector<16x128xf32>,
    } else {
    }
    return
  }
  func.func @transform_0(%arg0: i32, %arg1: i32) -> (i32, i32) {
    %c0_i32 = arith.constant 0 : i32
    %c0_i32_0 = arith.constant 0 : i32
    return %arg0, %c0_i32 : i32, i32
  }
  func.func @transform_1(%arg0: i32, %arg1: i32) -> (i32, i32) {
    %c0_i32 = arith.constant 0 : i32
    %c0_i32_0 = arith.constant 0 : i32
    return %c0_i32, %arg1 : i32, i32
  }
  func.func @transform_2(%arg0: i32, %arg1: i32) -> (i32, i32) {
    %c0_i32 = arith.constant 0 : i32
    %c0_i32_0 = arith.constant 0 : i32
    return %c0_i32, %arg1 : i32, i32
  }
  func.func @transform_3(%arg0: i32, %arg1: i32) -> (i32, i32) {
    %c0_i32 = arith.constant 0 : i32
    %c0_i32_0 = arith.constant 0 : i32
    return %arg1, %c0_i32 : i32, i32
  }
  func.func @transform_4(%arg0: i32, %arg1: i32) -> (i32, i32) {
    %c0_i32 = arith.constant 0 : i32
    %c0_i32_0 = arith.constant 0 : i32
    %c0_i32_1 = arith.constant 0 : i32
    return %c0_i32, %c0_i32_0 : i32, i32
  }
  func.func @transform_5(%arg0: i32, %arg1: i32) -> (i32, i32) {
    %c0_i32 = arith.constant 0 : i32
    %c0_i32_0 = arith.constant 0 : i32
    %c0_i32_1 = arith.constant 0 : i32
    return %c0_i32, %c0_i32_0 : i32, i32
  }
  func.func @transform_6(%arg0: i32, %arg1: i32) -> (i32, i32) {
    %c0_i32 = arith.constant 0 : i32
    %c0_i32_0 = arith.constant 0 : i32
    %c0_i32_1 = arith.constant 0 : i32
    return %c0_i32, %c0_i32_0 : i32, i32
  }
  func.func @transform_7(%arg0: i32, %arg1: i32) -> (i32, i32) {
    %c0_i32 = arith.constant 0 : i32
    %c0_i32_0 = arith.constant 0 : i32
    return %arg0, %c0_i32 : i32, i32
  }
}

module attributes {stable_mosaic.version = 11 : i64} {
  func.func @_attn_block_kernel(%arg0: i32, %arg1: i32, %arg2: memref<1x8x128xf32, #tpu.memory_space<vmem>>, %arg3: memref<1x8x128xf32, #tpu.memory_space<vmem>>, %arg4: memref<1x8x128xf32, #tpu.memory_space<vmem>>, %arg5: memref<128x128xf32, #tpu.memory_space<vmem>>, %arg6: memref<1x128xf32, #tpu.memory_space<vmem>>, %arg7: memref<1x8x128xf32, #tpu.memory_space<vmem>>, %arg8: memref<1x128xf32, #tpu.memory_space<vmem>>, %arg9: memref<1x128xf32, #tpu.memory_space<vmem>>, %arg10: memref<1x8x128xf32, #tpu.memory_space<vmem>>, %arg11: memref<8x128xf32, #tpu.memory_space<vmem>>) attributes {dimension_semantics = [#tpu.dimension_semantics<parallel>, #tpu.dimension_semantics<arbitrary>], iteration_bounds = array<i64: 2, 4>, scalar_prefetch = 0 : i64, scratch_operands = 1 : i64, tpu.core_type = #tpu.core_type<tc>, window_params = [{transform_indices = @transform_0, window_bounds = array<i64: 1, 8, 128>}, {transform_indices = @transform_1, window_bounds = array<i64: 1, 8, 128>}, {transform_indices = @transform_2, window_bounds = array<i64: 1, 8, 128>}, {transform_indices = @transform_3, window_bounds = array<i64: 128, 128>}, {pipeline_mode = #tpu.pipeline_mode<synchronous>, transform_indices = @transform_4, window_bounds = array<i64: 1, 128>}, {transform_indices = @transform_5, window_bounds = array<i64: 1, 8, 128>}, {pipeline_mode = #tpu.pipeline_mode<synchronous>, transform_indices = @transform_6, window_bounds = array<i64: 1, 128>}, {pipeline_mode = #tpu.pipeline_mode<synchronous>, transform_indices = @transform_7, window_bounds = array<i64: 1, 128>}, {transform_indices = @transform_8, window_bounds = array<i64: 1, 8, 128>}]} {
    %c0_i32 = arith.constant 0 : i32
    %0 = arith.cmpi eq, %arg1, %c0_i32 : i32
    %1 = arith.extui %0 : i1 to i32
    %c0_i32_0 = arith.constant 0 : i32
    %2 = arith.cmpi ne, %1, %c0_i32_0 : i32
    scf.if %2 {
      %cst_21 = arith.constant 0.000000e+00 : f32
      %31 = vector.broadcast %cst_21 : f32 to vector<8x128xf32>
      %c0_22 = arith.constant 0 : index
      %c0_23 = arith.constant 0 : index
      %32 = vector.load %arg11[%c0_22, %c0_23] : memref<8x128xf32, #tpu.memory_space<vmem>>, vector<8x128xf32>
      tpu.vector_store %arg11[%c0_22, %c0_23], %31 {strides = array<i32>} : memref<8x128xf32, #tpu.memory_space<vmem>>, vector<8x128xf32>,
    } else {
    }
    %c0 = arith.constant 0 : index
    %c0_1 = arith.constant 0 : index
    %c0_2 = arith.constant 0 : index
    %3 = vector.load %arg2[%c0, %c0_1, %c0_2] : memref<1x8x128xf32, #tpu.memory_space<vmem>>, vector<1x8x128xf32>
    %4 = vector.shape_cast %3 : vector<1x8x128xf32> to vector<8x128xf32>
    %cst = arith.constant 0.353553385 : f32
    %5 = vector.broadcast %cst : f32 to vector<8x128xf32>
    %6 = arith.mulf %4, %5 : vector<8x128xf32>
    %c0_3 = arith.constant 0 : index
    %c0_4 = arith.constant 0 : index
    %c0_5 = arith.constant 0 : index
    %7 = vector.load %arg3[%c0_3, %c0_4, %c0_5] : memref<1x8x128xf32, #tpu.memory_space<vmem>>, vector<1x8x128xf32>
    %8 = vector.shape_cast %7 : vector<1x8x128xf32> to vector<8x128xf32>
    %cst_6 = arith.constant dense<0.000000e+00> : vector<8x8xf32>
    %9 = tpu.matmul %6, %8, %cst_6 {dimension_numbers = #tpu.dot_dimension_numbers<[1], [1], [0], [0], [0, 0, 1, 0], [], []>} : vector<8x128xf32>, vector<8x128xf32>, vector<8x8xf32> -> vector<8x8xf32>
    %cst_7 = arith.constant dense<0xFF800000> : vector<8xf32>
    %10 = vector.multi_reduction <maximumf>, %9, %cst_7 [1] : vector<8x8xf32> to vector<8xf32>
    %11 = vector.shape_cast %10 : vector<8xf32> to vector<8x1xf32>
    %12 = vector.broadcast %11 : vector<8x1xf32> to vector<8x8xf32>
    %13 = arith.subf %9, %12 : vector<8x8xf32>
    %14 = math.exp %13 : vector<8x8xf32>
    %cst_8 = arith.constant dense<0.000000e+00> : vector<8xf32>
    %15 = vector.multi_reduction <add>, %14, %cst_8 [1] : vector<8x8xf32> to vector<8xf32>
    %16 = vector.shape_cast %15 : vector<8xf32> to vector<8x1xf32>
    %17 = tpu.reciprocal %16 {approx = true} : vector<8x1xf32> -> vector<8x1xf32>
    %18 = vector.broadcast %17 : vector<8x1xf32> to vector<8x8xf32>
    %19 = arith.mulf %14, %18 : vector<8x8xf32>
    %c0_9 = arith.constant 0 : index
    %c0_10 = arith.constant 0 : index
    %c0_11 = arith.constant 0 : index
    %20 = vector.load %arg4[%c0_9, %c0_10, %c0_11] : memref<1x8x128xf32, #tpu.memory_space<vmem>>, vector<1x8x128xf32>
    %21 = vector.shape_cast %20 : vector<1x8x128xf32> to vector<8x128xf32>
    %cst_12 = arith.constant dense<0.000000e+00> : vector<8x128xf32>
    %22 = tpu.matmul %19, %21, %cst_12 {dimension_numbers = #tpu.dot_dimension_numbers<[1], [0], [0], [1], [0, 0, 1, 1], [], []>} : vector<8x8xf32>, vector<8x128xf32>, vector<8x128xf32> -> vector<8x128xf32>
    %c0_13 = arith.constant 0 : index
    %c0_14 = arith.constant 0 : index
    %23 = vector.load %arg11[%c0_13, %c0_14] : memref<8x128xf32, #tpu.memory_space<vmem>>, vector<8x128xf32>
    %c0_15 = arith.constant 0 : index
    %c0_16 = arith.constant 0 : index
    %24 = vector.load %arg5[%c0_15, %c0_16] : memref<128x128xf32, #tpu.memory_space<vmem>>, vector<128x128xf32>
    %cst_17 = arith.constant dense<0.000000e+00> : vector<8x128xf32>
    %25 = tpu.matmul %22, %24, %cst_17 {dimension_numbers = #tpu.dot_dimension_numbers<[1], [0], [0], [1], [0, 0, 1, 1], [], []>} : vector<8x128xf32>, vector<128x128xf32>, vector<8x128xf32> -> vector<8x128xf32>
    %26 = arith.addf %23, %25 : vector<8x128xf32>
    %c0_18 = arith.constant 0 : index
    %c0_19 = arith.constant 0 : index
    %27 = vector.load %arg11[%c0_18, %c0_19] : memref<8x128xf32, #tpu.memory_space<vmem>>, vector<8x128xf32>
    tpu.vector_store %arg11[%c0_18, %c0_19], %26 {strides = array<i32>} : memref<8x128xf32, #tpu.memory_space<vmem>>, vector<8x128xf32>,
    %c3_i32 = arith.constant 3 : i32
    %28 = arith.cmpi eq, %arg1, %c3_i32 : i32
    %29 = arith.extui %28 : i1 to i32
    %c0_i32_20 = arith.constant 0 : i32
    %30 = arith.cmpi ne, %29, %c0_i32_20 : i32
    scf.if %30 {
      %c0_21 = arith.constant 0 : index
      %c0_22 = arith.constant 0 : index
      %31 = vector.load %arg11[%c0_21, %c0_22] : memref<8x128xf32, #tpu.memory_space<vmem>>, vector<8x128xf32>
      %c0_23 = arith.constant 0 : index
      %c0_24 = arith.constant 0 : index
      %32 = vector.load %arg6[%c0_23, %c0_24] : memref<1x128xf32, #tpu.memory_space<vmem>>, vector<1x128xf32>
      %33 = vector.broadcast %32 : vector<1x128xf32> to vector<8x128xf32>
      %34 = arith.addf %31, %33 : vector<8x128xf32>
      %c0_25 = arith.constant 0 : index
      %c0_26 = arith.constant 0 : index
      %c0_27 = arith.constant 0 : index
      %35 = vector.load %arg7[%c0_25, %c0_26, %c0_27] : memref<1x8x128xf32, #tpu.memory_space<vmem>>, vector<1x8x128xf32>
      %36 = vector.shape_cast %35 : vector<1x8x128xf32> to vector<8x128xf32>
      %37 = arith.addf %34, %36 : vector<8x128xf32>
      %c0_28 = arith.constant 0 : index
      %c0_29 = arith.constant 0 : index
      %38 = vector.load %arg8[%c0_28, %c0_29] : memref<1x128xf32, #tpu.memory_space<vmem>>, vector<1x128xf32>
      %c0_30 = arith.constant 0 : index
      %c0_31 = arith.constant 0 : index
      %39 = vector.load %arg9[%c0_30, %c0_31] : memref<1x128xf32, #tpu.memory_space<vmem>>, vector<1x128xf32>
      %40 = tpu.iota {dimensions = array<i32: 1>} : vector<1x128xi32>
      %c32_i32 = arith.constant 32 : i32
      %41 = vector.broadcast %c32_i32 : i32 to vector<1x128xi32>
      %42 = arith.cmpi slt, %40, %41 : vector<1x128xi32>
      %cst_32 = arith.constant 0.000000e+00 : f32
      %43 = vector.shape_cast %42 : vector<1x128xi1> to vector<1x128xi1>
      %44 = vector.broadcast %43 : vector<1x128xi1> to vector<8x128xi1>
      %45 = vector.broadcast %cst_32 : f32 to vector<8x128xf32>
      %46 = arith.select %44, %37, %45 : vector<8x128xi1>, vector<8x128xf32>
      %cst_33 = arith.constant dense<0.000000e+00> : vector<8xf32>
      %47 = vector.multi_reduction <add>, %46, %cst_33 [1] : vector<8x128xf32> to vector<8xf32>
      %48 = vector.shape_cast %47 : vector<8xf32> to vector<8x1xf32>
      %cst_34 = arith.constant 3.125000e-02 : f32
      %49 = vector.broadcast %cst_34 : f32 to vector<8x1xf32>
      %50 = arith.mulf %48, %49 : vector<8x1xf32>
      %51 = vector.broadcast %50 : vector<8x1xf32> to vector<8x128xf32>
      %52 = arith.subf %37, %51 : vector<8x128xf32>
      %cst_35 = arith.constant 0.000000e+00 : f32
      %53 = vector.shape_cast %42 : vector<1x128xi1> to vector<1x128xi1>
      %54 = vector.broadcast %53 : vector<1x128xi1> to vector<8x128xi1>
      %55 = vector.broadcast %cst_35 : f32 to vector<8x128xf32>
      %56 = arith.select %54, %52, %55 : vector<8x128xi1>, vector<8x128xf32>
      %57 = arith.mulf %56, %56 : vector<8x128xf32>
      %cst_36 = arith.constant dense<0.000000e+00> : vector<8xf32>
      %58 = vector.multi_reduction <add>, %57, %cst_36 [1] : vector<8x128xf32> to vector<8xf32>
      %59 = vector.shape_cast %58 : vector<8xf32> to vector<8x1xf32>
      %cst_37 = arith.constant 3.125000e-02 : f32
      %60 = vector.broadcast %cst_37 : f32 to vector<8x1xf32>
      %61 = arith.mulf %59, %60 : vector<8x1xf32>
      %62 = vector.broadcast %50 : vector<8x1xf32> to vector<8x128xf32>
      %63 = arith.subf %37, %62 : vector<8x128xf32>
      %cst_38 = arith.constant 9.99999974E-6 : f32
      %64 = vector.broadcast %cst_38 : f32 to vector<8x1xf32>
      %65 = arith.addf %61, %64 : vector<8x1xf32>
      %66 = math.rsqrt %65 : vector<8x1xf32>
      %67 = vector.broadcast %66 : vector<8x1xf32> to vector<8x128xf32>
      %68 = arith.mulf %63, %67 : vector<8x128xf32>
      %69 = vector.broadcast %38 : vector<1x128xf32> to vector<8x128xf32>
      %70 = arith.mulf %68, %69 : vector<8x128xf32>
      %71 = vector.broadcast %39 : vector<1x128xf32> to vector<8x128xf32>
      %72 = arith.addf %70, %71 : vector<8x128xf32>
      %c0_39 = arith.constant 0 : index
      %c0_40 = arith.constant 0 : index
      %c0_41 = arith.constant 0 : index
      %73 = vector.load %arg10[%c0_39, %c0_40, %c0_41] : memref<1x8x128xf32, #tpu.memory_space<vmem>>, vector<1x8x128xf32>
      %74 = vector.shape_cast %73 : vector<1x8x128xf32> to vector<8x128xf32>
      %75 = vector.shape_cast %72 : vector<8x128xf32> to vector<1x8x128xf32>
      tpu.vector_store %arg10[%c0_39, %c0_40, %c0_41], %75 {strides = array<i32>} : memref<1x8x128xf32, #tpu.memory_space<vmem>>, vector<1x8x128xf32>,
    } else {
    }
    return
  }
  func.func @transform_0(%arg0: i32, %arg1: i32) -> (i32, i32, i32) {
    %c0_i32 = arith.constant 0 : i32
    %0 = arith.addi %c0_i32, %arg1 : i32
    %c0_i32_0 = arith.constant 0 : i32
    %c0_i32_1 = arith.constant 0 : i32
    return %arg0, %c0_i32_0, %0 : i32, i32, i32
  }
  func.func @transform_1(%arg0: i32, %arg1: i32) -> (i32, i32, i32) {
    %c4_i32 = arith.constant 4 : i32
    %0 = arith.addi %c4_i32, %arg1 : i32
    %c0_i32 = arith.constant 0 : i32
    %c0_i32_0 = arith.constant 0 : i32
    return %arg0, %c0_i32, %0 : i32, i32, i32
  }
  func.func @transform_2(%arg0: i32, %arg1: i32) -> (i32, i32, i32) {
    %c8_i32 = arith.constant 8 : i32
    %0 = arith.addi %c8_i32, %arg1 : i32
    %c0_i32 = arith.constant 0 : i32
    %c0_i32_0 = arith.constant 0 : i32
    return %arg0, %c0_i32, %0 : i32, i32, i32
  }
  func.func @transform_3(%arg0: i32, %arg1: i32) -> (i32, i32) {
    %c0_i32 = arith.constant 0 : i32
    %c0_i32_0 = arith.constant 0 : i32
    return %arg1, %c0_i32 : i32, i32
  }
  func.func @transform_4(%arg0: i32, %arg1: i32) -> (i32, i32) {
    %c0_i32 = arith.constant 0 : i32
    %c0_i32_0 = arith.constant 0 : i32
    %c0_i32_1 = arith.constant 0 : i32
    return %c0_i32, %c0_i32_0 : i32, i32
  }
  func.func @transform_5(%arg0: i32, %arg1: i32) -> (i32, i32, i32) {
    %c0_i32 = arith.constant 0 : i32
    %c0_i32_0 = arith.constant 0 : i32
    %c0_i32_1 = arith.constant 0 : i32
    return %arg0, %c0_i32, %c0_i32_0 : i32, i32, i32
  }
  func.func @transform_6(%arg0: i32, %arg1: i32) -> (i32, i32) {
    %c0_i32 = arith.constant 0 : i32
    %c0_i32_0 = arith.constant 0 : i32
    %c0_i32_1 = arith.constant 0 : i32
    return %c0_i32, %c0_i32_0 : i32, i32
  }
  func.func @transform_7(%arg0: i32, %arg1: i32) -> (i32, i32) {
    %c0_i32 = arith.constant 0 : i32
    %c0_i32_0 = arith.constant 0 : i32
    %c0_i32_1 = arith.constant 0 : i32
    return %c0_i32, %c0_i32_0 : i32, i32
  }
  func.func @transform_8(%arg0: i32, %arg1: i32) -> (i32, i32, i32) {
    %c0_i32 = arith.constant 0 : i32
    %c0_i32_0 = arith.constant 0 : i32
    %c0_i32_1 = arith.constant 0 : i32
    return %arg0, %c0_i32, %c0_i32_0 : i32, i32, i32
  }
}

module attributes {stable_mosaic.version = 11 : i64} {
  func.func @_linear_kernel(%arg0: i32, %arg1: i32, %arg2: i32, %arg3: memref<16x128xf32, #tpu.memory_space<vmem>>, %arg4: memref<128x128xf32, #tpu.memory_space<vmem>>, %arg5: memref<1x128xf32, #tpu.memory_space<vmem>>, %arg6: memref<16x128xf32, #tpu.memory_space<vmem>>, %arg7: memref<16x128xf32, #tpu.memory_space<vmem>>) attributes {dimension_semantics = [#tpu.dimension_semantics<parallel>, #tpu.dimension_semantics<parallel>, #tpu.dimension_semantics<arbitrary>], iteration_bounds = array<i64: 1, 1, 1>, scalar_prefetch = 0 : i64, scratch_operands = 1 : i64, tpu.core_type = #tpu.core_type<tc>, window_params = [{transform_indices = @transform_0, window_bounds = array<i64: 16, 128>}, {transform_indices = @transform_1, window_bounds = array<i64: 128, 128>}, {transform_indices = @transform_2, window_bounds = array<i64: 1, 128>}, {transform_indices = @transform_3, window_bounds = array<i64: 16, 128>}]} {
    %c0_i32 = arith.constant 0 : i32
    %0 = arith.cmpi eq, %arg2, %c0_i32 : i32
    %1 = arith.extui %0 : i1 to i32
    %c0_i32_0 = arith.constant 0 : i32
    %2 = arith.cmpi ne, %1, %c0_i32_0 : i32
    scf.if %2 {
      %cst_10 = arith.constant 0.000000e+00 : f32
      %12 = vector.broadcast %cst_10 : f32 to vector<16x128xf32>
      %c0_11 = arith.constant 0 : index
      %c0_12 = arith.constant 0 : index
      %13 = vector.load %arg7[%c0_11, %c0_12] : memref<16x128xf32, #tpu.memory_space<vmem>>, vector<16x128xf32>
      tpu.vector_store %arg7[%c0_11, %c0_12], %12 {strides = array<i32>} : memref<16x128xf32, #tpu.memory_space<vmem>>, vector<16x128xf32>,
    } else {
    }
    %c0 = arith.constant 0 : index
    %c0_1 = arith.constant 0 : index
    %3 = vector.load %arg7[%c0, %c0_1] : memref<16x128xf32, #tpu.memory_space<vmem>>, vector<16x128xf32>
    %c0_2 = arith.constant 0 : index
    %c0_3 = arith.constant 0 : index
    %4 = vector.load %arg3[%c0_2, %c0_3] : memref<16x128xf32, #tpu.memory_space<vmem>>, vector<16x128xf32>
    %c0_4 = arith.constant 0 : index
    %c0_5 = arith.constant 0 : index
    %5 = vector.load %arg4[%c0_4, %c0_5] : memref<128x128xf32, #tpu.memory_space<vmem>>, vector<128x128xf32>
    %cst = arith.constant dense<0.000000e+00> : vector<16x128xf32>
    %6 = tpu.matmul %4, %5, %cst {dimension_numbers = #tpu.dot_dimension_numbers<[1], [0], [0], [1], [0, 0, 1, 1], [], []>} : vector<16x128xf32>, vector<128x128xf32>, vector<16x128xf32> -> vector<16x128xf32>
    %7 = arith.addf %3, %6 : vector<16x128xf32>
    %c0_6 = arith.constant 0 : index
    %c0_7 = arith.constant 0 : index
    %8 = vector.load %arg7[%c0_6, %c0_7] : memref<16x128xf32, #tpu.memory_space<vmem>>, vector<16x128xf32>
    tpu.vector_store %arg7[%c0_6, %c0_7], %7 {strides = array<i32>} : memref<16x128xf32, #tpu.memory_space<vmem>>, vector<16x128xf32>,
    %c0_i32_8 = arith.constant 0 : i32
    %9 = arith.cmpi eq, %arg2, %c0_i32_8 : i32
    %10 = arith.extui %9 : i1 to i32
    %c0_i32_9 = arith.constant 0 : i32
    %11 = arith.cmpi ne, %10, %c0_i32_9 : i32
    scf.if %11 {
      %c0_10 = arith.constant 0 : index
      %c0_11 = arith.constant 0 : index
      %12 = vector.load %arg7[%c0_10, %c0_11] : memref<16x128xf32, #tpu.memory_space<vmem>>, vector<16x128xf32>
      %c0_12 = arith.constant 0 : index
      %c0_13 = arith.constant 0 : index
      %13 = vector.load %arg5[%c0_12, %c0_13] : memref<1x128xf32, #tpu.memory_space<vmem>>, vector<1x128xf32>
      %14 = vector.broadcast %13 : vector<1x128xf32> to vector<16x128xf32>
      %15 = arith.addf %12, %14 : vector<16x128xf32>
      %c0_14 = arith.constant 0 : index
      %c0_15 = arith.constant 0 : index
      %16 = vector.load %arg6[%c0_14, %c0_15] : memref<16x128xf32, #tpu.memory_space<vmem>>, vector<16x128xf32>
      tpu.vector_store %arg6[%c0_14, %c0_15], %15 {strides = array<i32>} : memref<16x128xf32, #tpu.memory_space<vmem>>, vector<16x128xf32>,
    } else {
    }
    return
  }
  func.func @transform_0(%arg0: i32, %arg1: i32, %arg2: i32) -> (i32, i32) {
    %c0_i32 = arith.constant 0 : i32
    return %arg0, %arg2 : i32, i32
  }
  func.func @transform_1(%arg0: i32, %arg1: i32, %arg2: i32) -> (i32, i32) {
    %c0_i32 = arith.constant 0 : i32
    return %arg2, %arg1 : i32, i32
  }
  func.func @transform_2(%arg0: i32, %arg1: i32, %arg2: i32) -> (i32, i32) {
    %c0_i32 = arith.constant 0 : i32
    %c0_i32_0 = arith.constant 0 : i32
    return %c0_i32, %arg1 : i32, i32
  }
  func.func @transform_3(%arg0: i32, %arg1: i32, %arg2: i32) -> (i32, i32) {
    %c0_i32 = arith.constant 0 : i32
    return %arg0, %arg1 : i32, i32
  }
}

</mosaic_0001>

<llo_original>
// kernel: transformer_ctc_forward.8
$region0: #{transformer_ctc_forward.8}
  #allocation0 [shape = 'u32[]', space=smem, size = 0x4, offset = 0x4, fixed_abs, tag = 'smem constant byte address 0x4 - core index']
  #allocation1 [shape = 'u32[72,128]{1,0:T(1,128)}', space=vmem, size = 0x9000, scoped, tag = 'internal scratch']
  #allocation2 [shape = 'f32[16,128]{1,0:T(8,128)}', space=vmem, size = 0x2000, scoped, tag = 'scratch operand']
  %s0 = inlined_call_operand.vmem [shape: f32[16,128], index: 0, kind: input, shape index: {}]
  %s1 = inlined_call_operand.vmem [shape: f32[128,128], index: 1, kind: input, shape index: {}]
  %s2 = inlined_call_operand.vmem [shape: f32[1,128], index: 2, kind: input, shape index: {}]
  %s3 = inlined_call_operand.vmem [shape: f32[16,128], index: 3, kind: input, shape index: {}]
  %s4 = inlined_call_operand.vmem [shape: f32[16,128], index: 4, kind: output, shape index: {}]
  %s5 = sld [smem:[#allocation0]]
  $region34: #{transformer_ctc_forward.8} parent=0
    _
  %s7 = ssub.s32 1, %s5
  %s8 = scalar_select 0, %s7, %s5
  // Predicated region
  $region2: #{transformer_ctc_forward.8} parent=0 // pred_check
    _
  $region3: #{transformer_ctc_forward.8} parent=0 // pred_check_branch
    %10 = sbr.rel (0) target = $region5
  $region4: #{transformer_ctc_forward.8} parent=0 // pred_region
    _
  $region5: #{transformer_ctc_forward.8} parent=0 // pred_fallthru
    _
  // Predicated region
  $region6: #{transformer_ctc_forward.8} parent=0 // pred_check
    _
  $region7: #{transformer_ctc_forward.8} parent=0 // pred_check_branch
    %12 = sbr.rel (0) target = $region9
  $region8: #{transformer_ctc_forward.8} parent=0 // pred_region
    _
  $region9: #{transformer_ctc_forward.8} parent=0 // pred_fallthru
    _
  // Predicated region
  $region10: #{transformer_ctc_forward.8} parent=0 // pred_check
    _
  $region11: #{transformer_ctc_forward.8} parent=0 // pred_check_branch
    %14 = sbr.rel (0) target = $region13
  $region12: #{transformer_ctc_forward.8} parent=0 // pred_region
    _
  $region13: #{transformer_ctc_forward.8} parent=0 // pred_fallthru
    _
  // Predicated region
  $region14: #{transformer_ctc_forward.8} parent=0 // pred_check
    _
  $region15: #{transformer_ctc_forward.8} parent=0 // pred_check_branch
    %16 = sbr.rel (0) target = $region17
  $region16: #{transformer_ctc_forward.8} parent=0 // pred_region
    _
  $region17: #{transformer_ctc_forward.8} parent=0 // pred_fallthru
    _
  %p17 = scmp.eq.s32.totalorder 0, 0
  // Predicated region
  $region18: #{transformer_ctc_forward.8} parent=0 // pred_check
    %p18 = pneg %p17
  $region19: #{transformer_ctc_forward.8} parent=0 // pred_check_branch
    %20 = sbr.rel (%p18) target = $region21
  $region20: #{transformer_ctc_forward.8} parent=0 // pred_region
    %21 = vst [vmem:[#allocation2] sm:$0xff] 0.0
    %22 = vst [vmem:[#allocation2 + $0x8] sm:$0xff] 0.0
  $region21: #{transformer_ctc_forward.8} parent=0 // pred_fallthru
    _
  %v23 = vld [vmem:[#allocation2] sm:$0xff]
  %v24 = vld [vmem:[#allocation2 + $0x8] sm:$0xff]
  %v25 = vld [vmem:[%s0] sm:$0xff]
  %v26 = vld [vmem:[%s0 + $0x8] sm:$0xff]
  %v27 = vld [vmem:[%s1] sm:$0xff]
  %v28 = vld [vmem:[%s1 + $0x8] sm:$0xff]
  %v29 = vld [vmem:[%s1 + $0x10] sm:$0xff]
  %v30 = vld [vmem:[%s1 + $0x18] sm:$0xff]
  %v31 = vld [vmem:[%s1 + $0x20] sm:$0xff]
  %v32 = vld [vmem:[%s1 + $0x28] sm:$0xff]
  %v33 = vld [vmem:[%s1 + $0x30] sm:$0xff]
  %v34 = vld [vmem:[%s1 + $0x38] sm:$0xff]
  %v35 = vld [vmem:[%s1 + $0x40] sm:$0xff]
  %v36 = vld [vmem:[%s1 + $0x48] sm:$0xff]
  %v37 = vld [vmem:[%s1 + $0x50] sm:$0xff]
  %v38 = vld [vmem:[%s1 + $0x58] sm:$0xff]
  %v39 = vld [vmem:[%s1 + $0x60] sm:$0xff]
  %v40 = vld [vmem:[%s1 + $0x68] sm:$0xff]
  %v41 = vld [vmem:[%s1 + $0x70] sm:$0xff]
  %v42 = vld [vmem:[%s1 + $0x78] sm:$0xff]
  %43 = vmatpush.msra.mxu0 %v42
  %44 = vmatpush.msra.mxu0 %v41
  %45 = vmatpush.msra.mxu0 %v40
  %46 = vmatpush.msra.mxu0 %v39
  %47 = vmatpush.msra.mxu0 %v38
  %48 = vmatpush.msra.mxu0 %v37
  %49 = vmatpush.msra.mxu0 %v36
  %50 = vmatpush.msra.mxu0 %v35
  %51 = vmatpush.msra.mxu0 %v34
  %52 = vmatpush.msra.mxu0 %v33
  %53 = vmatpush.msra.mxu0 %v32
  %54 = vmatpush.msra.mxu0 %v31
  %55 = vmatpush.msra.mxu0 %v30
  %56 = vmatpush.msra.mxu0 %v29
  %57 = vmatpush.msra.mxu0 %v28
  %58 = vmatpush.msra.mxu0 %v27
  %59 = vmatmul.f32.gmra.mxu0 %v25
  %v60 = vpop.f32.mrf.mxu0
  %v61 = vadd.f32 0.0, %v60
  %62 = vmatmul.f32.gmra.mxu0 %v26
  %v63 = vpop.f32.mrf.mxu0
  %v64 = vadd.f32 0.0, %v63
  %65 = vdwg.mxu0
  %v66 = vadd.f32 %v23, %v61
  %v67 = vadd.f32 %v24, %v64
  %68 = vst [vmem:[#allocation2] sm:$0xff] %v66
  %69 = vst [vmem:[#allocation2 + $0x8] sm:$0xff] %v67
  // Predicated region
  $region22: #{transformer_ctc_forward.8} parent=0 // pred_check
    %p70 = pneg %p17
  $region23: #{transformer_ctc_forward.8} parent=0 // pred_check_branch
    %72 = sbr.rel (%p70) target = $region25
  $region24: #{transformer_ctc_forward.8} parent=0 // pred_region
    %v73 = vld [vmem:[#allocation2] sm:$0xff]
    %v74 = vld [vmem:[#allocation2 + $0x8] sm:$0xff]
    %v75 = vld [vmem:[%s2] sm:$0x1]
    %v77 = vperm.slane %v75, 0
    %v79 = vadd.f32 %v73, %v77
    %v80 = vadd.f32 %v74, %v77
    %v81 = vld [vmem:[%s3] sm:$0xff]
    %v82 = vld [vmem:[%s3 + $0x8] sm:$0xff]
    %v83 = vadd.f32 %v79, %v81
    %v84 = vadd.f32 %v80, %v82
    %85 = vst [vmem:[%s4] sm:$0xff] %v83
    %86 = vst [vmem:[%s4 + $0x8] sm:$0xff] %v84
  $region25: #{transformer_ctc_forward.8} parent=0 // pred_fallthru
    _
  // Predicated region
  $region26: #{transformer_ctc_forward.8} parent=0 // pred_check
    _
  $region27: #{transformer_ctc_forward.8} parent=0 // pred_check_branch
    %88 = sbr.rel (0) target = $region29
  $region28: #{transformer_ctc_forward.8} parent=0 // pred_region
    _
  $region29: #{transformer_ctc_forward.8} parent=0 // pred_fallthru
    _
  // Predicated region
  $region30: #{transformer_ctc_forward.8} parent=0 // pred_check
    _
  $region31: #{transformer_ctc_forward.8} parent=0 // pred_check_branch
    %90 = sbr.rel (0) target = $region33
  $region32: #{transformer_ctc_forward.8} parent=0 // pred_region
    _
  $region33: #{transformer_ctc_forward.8} parent=0 // pred_fallthru
    _

// kernel: transformer_ctc_forward.11
$region0: #{transformer_ctc_forward.11}
  #allocation0 [shape = 'u32[]', space=smem, size = 0x4, offset = 0x4, fixed_abs, tag = 'smem constant byte address 0x4 - core index']
  #allocation1 [shape = 'u32[72,128]{1,0:T(1,128)}', space=vmem, size = 0x9000, scoped, tag = 'internal scratch']
  #allocation2 [shape = 'f32[16,128]{1,0:T(8,128)}', space=vmem, size = 0x2000, scoped, tag = 'scratch operand']
  %s0 = inlined_call_operand.vmem [shape: f32[16,128], index: 0, kind: input, shape index: {}, may-alias: {0,7}]
  %s1 = inlined_call_operand.hbm [shape: f32[128,128], index: 1, kind: input, shape index: {}]
  %s2 = inlined_call_operand.vmem [shape: f32[1,128], index: 2, kind: input, shape index: {}]
  %s3 = inlined_call_operand.hbm [shape: f32[128,128], index: 3, kind: input, shape index: {}]
  %s4 = inlined_call_operand.vmem [shape: f32[1,128], index: 4, kind: input, shape index: {}]
  %s5 = inlined_call_operand.vmem [shape: f32[1,128], index: 5, kind: input, shape index: {}]
  %s6 = inlined_call_operand.vmem [shape: f32[1,128], index: 6, kind: input, shape index: {}]
  %s7 = inlined_call_operand.vmem [shape: f32[16,128], index: 7, kind: output, shape index: {}, may-alias: {0,7}]
  %s8 = sld [smem:[#allocation0]]
  $region54: #{transformer_ctc_forward.11} parent=0
    _
  %s10 = ssub.s32 1, %s8
  %s11 = scalar_select 0, %s10, %s8
  $region1: #{transformer_ctc_forward.11} parent=0
    #allocation3 [shape = 'u8[65536]{0}', space=vmem, size = 0x10000, scoped, tag = 'input window, operand 1, single buffered']
    #allocation4 [shape = 's32[1]{0}', space=sflag, size = 0x4, scoped, tag = 'scoped memory for transformer_ctc_forward.11']
    #allocation5 [shape = 'u8[65536]{0}', space=vmem, size = 0x10000, scoped, tag = 'input window, operand 3, single buffered']
    #allocation6 [shape = 's32[1]{0}', space=sflag, size = 0x4, scoped, tag = 'scoped memory for transformer_ctc_forward.11']
    %12 = vsyncpa [#allocation4], 0
    %13 = vsyncpa [#allocation6], 0
    // Predicated region
    $region2: #{transformer_ctc_forward.11} parent=1 // pred_check
      _
    $region3: #{transformer_ctc_forward.11} parent=1 // pred_check_branch
      %15 = sbr.rel (0) target = $region5
    $region4: #{transformer_ctc_forward.11} parent=1 // pred_region
      _
    $region5: #{transformer_ctc_forward.11} parent=1 // pred_fallthru
      _
    // Predicated region
    $region6: #{transformer_ctc_forward.11} parent=1 // pred_check
      _
    $region7: #{transformer_ctc_forward.11} parent=1 // pred_check_branch
      %17 = sbr.rel (0) target = $region9
    $region8: #{transformer_ctc_forward.11} parent=1 // pred_region
      %19 = vsyncadd [#allocation4], 0
      %s20 = sshll.u32 %s1, 4
      %s21 = int_to_ptr.hbm [resolvable:$true] %s20
      %s22 = sshll.u32 [#allocation3], 4
      %s23 = int_to_ptr.vmem [resolvable:$true] %s22
      %28 = dma.hbm_to_vmem [thread:$0]  %s21, 2048, %s23, [#allocation4], 128, 128, 8
    $region9: #{transformer_ctc_forward.11} parent=1 // pred_fallthru
      _
    // Predicated region
    $region10: #{transformer_ctc_forward.11} parent=1 // pred_check
      _
    $region11: #{transformer_ctc_forward.11} parent=1 // pred_check_branch
      %30 = sbr.rel (0) target = $region13
    $region12: #{transformer_ctc_forward.11} parent=1 // pred_region
      _
    $region13: #{transformer_ctc_forward.11} parent=1 // pred_fallthru
      _
    // Predicated region
    $region14: #{transformer_ctc_forward.11} parent=1 // pred_check
      _
    $region15: #{transformer_ctc_forward.11} parent=1 // pred_check_branch
      %32 = sbr.rel (0) target = $region17
    $region16: #{transformer_ctc_forward.11} parent=1 // pred_region
      %34 = vsyncadd [#allocation6], 0
      %s35 = sshll.u32 %s3, 4
      %s36 = int_to_ptr.hbm [resolvable:$true] %s35
      %s37 = sshll.u32 [#allocation5], 4
      %s38 = int_to_ptr.vmem [resolvable:$true] %s37
      %43 = dma.hbm_to_vmem [thread:$0]  %s36, 2048, %s38, [#allocation6], 128, 128, 8
    $region17: #{transformer_ctc_forward.11} parent=1 // pred_fallthru
      _
    // Predicated region
    $region18: #{transformer_ctc_forward.11} parent=1 // pred_check
      _
    $region19: #{transformer_ctc_forward.11} parent=1 // pred_check_branch
      %45 = sbr.rel (0) target = $region21
    $region20: #{transformer_ctc_forward.11} parent=1 // pred_region
      _
    $region21: #{transformer_ctc_forward.11} parent=1 // pred_fallthru
      _
    // Predicated region
    $region22: #{transformer_ctc_forward.11} parent=1 // pred_check
      _
    $region23: #{transformer_ctc_forward.11} parent=1 // pred_check_branch
      %47 = sbr.rel (0) target = $region25
    $region24: #{transformer_ctc_forward.11} parent=1 // pred_region
      _
    $region25: #{transformer_ctc_forward.11} parent=1 // pred_fallthru
      _
    // Predicated region
    $region26: #{transformer_ctc_forward.11} parent=1 // pred_check
      _
    $region27: #{transformer_ctc_forward.11} parent=1 // pred_check_branch
      %49 = sbr.rel (0) target = $region29
    $region28: #{transformer_ctc_forward.11} parent=1 // pred_region
      _
    $region29: #{transformer_ctc_forward.11} parent=1 // pred_fallthru
      _
    // Predicated region
    $region30: #{transformer_ctc_forward.11} parent=1 // pred_check
      _
    $region31: #{transformer_ctc_forward.11} parent=1 // pred_check_branch
      %51 = sbr.rel (0) target = $region33
    $region32: #{transformer_ctc_forward.11} parent=1 // pred_region
      %53 = dma.done [#allocation4], 2048
    $region33: #{transformer_ctc_forward.11} parent=1 // pred_fallthru
      _
    // Predicated region
    $region34: #{transformer_ctc_forward.11} parent=1 // pred_check
      _
    $region35: #{transformer_ctc_forward.11} parent=1 // pred_check_branch
      %55 = sbr.rel (0) target = $region37
    $region36: #{transformer_ctc_forward.11} parent=1 // pred_region
      %57 = dma.done [#allocation6], 2048
    $region37: #{transformer_ctc_forward.11} parent=1 // pred_fallthru
      _
    %p58 = scmp.eq.s32.totalorder 0, 0
    // Predicated region
    $region38: #{transformer_ctc_forward.11} parent=1 // pred_check
      %p59 = pneg %p58
    $region39: #{transformer_ctc_forward.11} parent=1 // pred_check_branch
      %61 = sbr.rel (%p59) target = $region41
    $region40: #{transformer_ctc_forward.11} parent=1 // pred_region
      %62 = vst [vmem:[#allocation2] sm:$0xff] 0.0
      %63 = vst [vmem:[#allocation2 + $0x8] sm:$0xff] 0.0
    $region41: #{transformer_ctc_forward.11} parent=1 // pred_fallthru
      _
    %v64 = vld [vmem:[%s0] sm:$0xff]
    %v65 = vld [vmem:[%s0 + $0x8] sm:$0xff]
    %v66 = vld [vmem:[#allocation3] sm:$0xff]
    %v67 = vld [vmem:[#allocation3 + $0x8] sm:$0xff]
    %v68 = vld [vmem:[#allocation3 + $0x10] sm:$0xff]
    %v69 = vld [vmem:[#allocation3 + $0x18] sm:$0xff]
    %v70 = vld [vmem:[#allocation3 + $0x20] sm:$0xff]
    %v71 = vld [vmem:[#allocation3 + $0x28] sm:$0xff]
    %v72 = vld [vmem:[#allocation3 + $0x30] sm:$0xff]
    %v73 = vld [vmem:[#allocation3 + $0x38] sm:$0xff]
    %v74 = vld [vmem:[#allocation3 + $0x40] sm:$0xff]
    %v75 = vld [vmem:[#allocation3 + $0x48] sm:$0xff]
    %v76 = vld [vmem:[#allocation3 + $0x50] sm:$0xff]
    %v77 = vld [vmem:[#allocation3 + $0x58] sm:$0xff]
    %v78 = vld [vmem:[#allocation3 + $0x60] sm:$0xff]
    %v79 = vld [vmem:[#allocation3 + $0x68] sm:$0xff]
    %v80 = vld [vmem:[#allocation3 + $0x70] sm:$0xff]
    %v81 = vld [vmem:[#allocation3 + $0x78] sm:$0xff]
    %v82 = vld [vmem:[%s2] sm:$0x1]
    %v84 = vperm.slane %v82, 0
    %86 = vmatpush.msra.mxu0 %v81
    %87 = vmatpush.msra.mxu0 %v80
    %88 = vmatpush.msra.mxu0 %v79
    %89 = vmatpush.msra.mxu0 %v78
    %90 = vmatpush.msra.mxu0 %v77
    %91 = vmatpush.msra.mxu0 %v76
    %92 = vmatpush.msra.mxu0 %v75
    %93 = vmatpush.msra.mxu0 %v74
    %94 = vmatpush.msra.mxu0 %v73
    %95 = vmatpush.msra.mxu0 %v72
    %96 = vmatpush.msra.mxu0 %v71
    %97 = vmatpush.msra.mxu0 %v70
    %98 = vmatpush.msra.mxu0 %v69
    %99 = vmatpush.msra.mxu0 %v68
    %100 = vmatpush.msra.mxu0 %v67
    %101 = vmatpush.msra.mxu0 %v66
    %102 = vmatmul.f32.gmra.mxu0 %v64
    %v103 = vpop.f32.mrf.mxu0
    %v104 = vadd.f32 %v84, %v103
    %105 = vmatmul.f32.gmra.mxu0 %v65
    %v106 = vpop.f32.mrf.mxu0
    %v107 = vadd.f32 %v84, %v106
    %108 = vdwg.mxu0
    %v109 = vmax.f32 %v104, 0.0
    %v110 = vmax.f32 %v107, 0.0
    %v111 = vld [vmem:[#allocation2] sm:$0xff]
    %v112 = vld [vmem:[#allocation2 + $0x8] sm:$0xff]
    %v113 = vld [vmem:[#allocation5] sm:$0xff]
    %v114 = vld [vmem:[#allocation5 + $0x8] sm:$0xff]
    %v115 = vld [vmem:[#allocation5 + $0x10] sm:$0xff]
    %v116 = vld [vmem:[#allocation5 + $0x18] sm:$0xff]
    %v117 = vld [vmem:[#allocation5 + $0x20] sm:$0xff]
    %v118 = vld [vmem:[#allocation5 + $0x28] sm:$0xff]
    %v119 = vld [vmem:[#allocation5 + $0x30] sm:$0xff]
    %v120 = vld [vmem:[#allocation5 + $0x38] sm:$0xff]
    %v121 = vld [vmem:[#allocation5 + $0x40] sm:$0xff]
    %v122 = vld [vmem:[#allocation5 + $0x48] sm:$0xff]
    %v123 = vld [vmem:[#allocation5 + $0x50] sm:$0xff]
    %v124 = vld [vmem:[#allocation5 + $0x58] sm:$0xff]
    %v125 = vld [vmem:[#allocation5 + $0x60] sm:$0xff]
    %v126 = vld [vmem:[#allocation5 + $0x68] sm:$0xff]
    %v127 = vld [vmem:[#allocation5 + $0x70] sm:$0xff]
    %v128 = vld [vmem:[#allocation5 + $0x78] sm:$0xff]
    %129 = vmatpush.msra.mxu0 %v128
    %130 = vmatpush.msra.mxu0 %v127
    %131 = vmatpush.msra.mxu0 %v126
    %132 = vmatpush.msra.mxu0 %v125
    %133 = vmatpush.msra.mxu0 %v124
    %134 = vmatpush.msra.mxu0 %v123
    %135 = vmatpush.msra.mxu0 %v122
    %136 = vmatpush.msra.mxu0 %v121
    %137 = vmatpush.msra.mxu0 %v120
    %138 = vmatpush.msra.mxu0 %v119
    %139 = vmatpush.msra.mxu0 %v118
    %140 = vmatpush.msra.mxu0 %v117
    %141 = vmatpush.msra.mxu0 %v116
    %142 = vmatpush.msra.mxu0 %v115
    %143 = vmatpush.msra.mxu0 %v114
    %144 = vmatpush.msra.mxu0 %v113
    %145 = vmatmul.f32.gmra.mxu0 %v109
    %v146 = vpop.f32.mrf.mxu0
    %v147 = vadd.f32 0.0, %v146
    %148 = vmatmul.f32.gmra.mxu0 %v110
    %v149 = vpop.f32.mrf.mxu0
    %v150 = vadd.f32 0.0, %v149
    %151 = vdwg.mxu0
    %v152 = vadd.f32 %v111, %v147
    %v153 = vadd.f32 %v112, %v150
    %154 = vst [vmem:[#allocation2] sm:$0xff] %v152
    %155 = vst [vmem:[#allocation2 + $0x8] sm:$0xff] %v153
    // Predicated region
    $region42: #{transformer_ctc_forward.11} parent=1 // pred_check
      %p156 = pneg %p58
    $region43: #{transformer_ctc_forward.11} parent=1 // pred_check_branch
      %158 = sbr.rel (%p156) target = $region45
    $region44: #{transformer_ctc_forward.11} parent=1 // pred_region
      %v159 = vld [vmem:[#allocation2] sm:$0xff]
      %v160 = vld [vmem:[#allocation2 + $0x8] sm:$0xff]
      %v161 = vld [vmem:[%s4] sm:$0x1]
      %v163 = vperm.slane %v161, 0
      %v165 = vadd.f32 %v159, %v163
      %v166 = vadd.f32 %v160, %v163
      %v167 = vld [vmem:[%s0] sm:$0xff]
      %v168 = vld [vmem:[%s0 + $0x8] sm:$0xff]
      %v169 = vadd.f32 %v165, %v167
      %v170 = vadd.f32 %v166, %v168
      %v171 = vld [vmem:[%s5] sm:$0x1]
      %v172 = vld [vmem:[%s6] sm:$0x1]
      %v173 = vlaneseq
      %v174 = vand.u32 %v173, 127
      %vm175 = vcmp.lt.s32.totalorder %v174, 32
      %v176 = vsel %vm175, 1, 0
      %vm177 = vcmp.eq.s32.totalorder %v176, 1
      %v178 = vsel %vm177, %v169, 0.0
      %v179 = vsel %vm177, %v170, 0.0
      %180 = vadd.xlane.f32.xlu0 %v178
      %v181 = vpop.xlane.xlu0 %180
      %182 = vadd.xlane.f32.xlu0 %v179
      %v183 = vpop.xlane.xlu0 %182
      %v184 = vmul.f32 %v181, 0.03125
      %v185 = vmul.f32 %v183, 0.03125
      %v186 = vsub.f32 %v169, %v184
      %v187 = vsub.f32 %v170, %v185
      %v188 = vsel %vm177, %v186, 0.0
      %v189 = vsel %vm177, %v187, 0.0
      %v190 = vmul.f32 %v188, %v188
      %v191 = vmul.f32 %v189, %v189
      %192 = vadd.xlane.f32.xlu0 %v190
      %v193 = vpop.xlane.xlu0 %192
      %194 = vadd.xlane.f32.xlu0 %v191
      %v195 = vpop.xlane.xlu0 %194
      %v196 = vmul.f32 %v193, 0.03125
      %v197 = vmul.f32 %v195, 0.03125
      %v198 = vadd.f32 %v196, 1e-05
      %v199 = vadd.f32 %v197, 1e-05
      %v200 = vrsqrt.pop %v198
      %v201 = vmul.f32 %v200, %v198
      %v202 = vmul.f32 %v201, %v200
      %v203 = vmul.f32 0.5, %v202
      %v204 = vsub.f32 1.5, %v203
      %v205 = vmul.f32 %v200, %v204
      %vm206 = vweird.f32 %v198
      %vm207 = vweird.f32 %v200
      %vm208 = vmor %vm206, %vm207
      %v209 = vsel %vm208, %v200, %v205
      %v210 = vrsqrt.pop %v199
      %v211 = vmul.f32 %v210, %v199
      %v212 = vmul.f32 %v211, %v210
      %v213 = vmul.f32 0.5, %v212
      %v214 = vsub.f32 1.5, %v213
      %v215 = vmul.f32 %v210, %v214
      %vm216 = vweird.f32 %v199
      %vm217 = vweird.f32 %v210
      %vm218 = vmor %vm216, %vm217
      %v219 = vsel %vm218, %v210, %v215
      %v220 = vmul.f32 %v186, %v209
      %v221 = vmul.f32 %v187, %v219
      %v223 = vperm.slane %v171, 0
      %v225 = vmul.f32 %v220, %v223
      %v226 = vmul.f32 %v221, %v223
      %v228 = vperm.slane %v172, 0
      %v230 = vadd.f32 %v225, %v228
      %v231 = vadd.f32 %v226, %v228
      %232 = vst [vmem:[%s7] sm:$0xff] %v230
      %233 = vst [vmem:[%s7 + $0x8] sm:$0xff] %v231
    $region45: #{transformer_ctc_forward.11} parent=1 // pred_fallthru
      _
    // Predicated region
    $region46: #{transformer_ctc_forward.11} parent=1 // pred_check
      _
    $region47: #{transformer_ctc_forward.11} parent=1 // pred_check_branch
      %235 = sbr.rel (0) target = $region49
    $region48: #{transformer_ctc_forward.11} parent=1 // pred_region
      _
    $region49: #{transformer_ctc_forward.11} parent=1 // pred_fallthru
      _
    // Predicated region
    $region50: #{transformer_ctc_forward.11} parent=1 // pred_check
      _
    $region51: #{transformer_ctc_forward.11} parent=1 // pred_check_branch
      %237 = sbr.rel (0) target = $region53
    $region52: #{transformer_ctc_forward.11} parent=1 // pred_region
      _
    $region53: #{transformer_ctc_forward.11} parent=1 // pred_fallthru
      _
    %238 = vsyncpa [#allocation4], 1
    %239 = vsyncpa [#allocation6], 1

// kernel: transformer_ctc_forward.9
$region0: #{transformer_ctc_forward.9}
  #allocation0 [shape = 'u32[]', space=smem, size = 0x4, offset = 0x4, fixed_abs, tag = 'smem constant byte address 0x4 - core index']
  #allocation1 [shape = 'u32[72,128]{1,0:T(1,128)}', space=vmem, size = 0x9000, scoped, tag = 'internal scratch']
  #allocation2 [shape = 'f32[16,256]{1,0:T(8,128)}', space=vmem, size = 0x4000, scoped, tag = 'scratch operand']
  %s0 = inlined_call_operand.vmem [shape: f32[16,128], index: 0, kind: input, shape index: {}]
  %s1 = inlined_call_operand.hbm [shape: f32[128,1536], index: 1, kind: input, shape index: {}]
  %s2 = inlined_call_operand.vmem [shape: f32[1,1536], index: 2, kind: input, shape index: {}]
  %s3 = inlined_call_operand.vmem [shape: f32[16,1536], index: 3, kind: output, shape index: {}]
  %s4 = sld [smem:[#allocation0]]
  $region76: #{transformer_ctc_forward.9} parent=0
    _
  %s6 = ssub.s32 1, %s4
  %s7 = scalar_select 0, %s6, %s4
  $region1: #{transformer_ctc_forward.9} parent=0
    #allocation3 [shape = 'u8[262144]{0}', space=vmem, size = 0x40000, scoped, tag = 'input window, operand 1']
    #allocation4 [shape = 's32[2]{0}', space=sflag, size = 0x8, scoped, tag = 'scoped memory for transformer_ctc_forward.9']
    #allocation5 [shape = 'u8[32768]{0}', space=vmem, size = 0x8000, scoped, tag = 'output window, operand 0']
    %8 = vsyncpa [#allocation4], 0
    %s9 = scalar_lea.sflag [#allocation4], 1
    %10 = vsyncpa %s9, 0
    loop: start=0, step=1, limit=8
    $region2: #{transformer_ctc_forward.9} parent=1 // loop_pre_header
      _
    $region3: #{transformer_ctc_forward.9} parent=1 // loop_header
      %s12 = sphi 0, %s16
      %p13 = scmp.ge.s32.totalorder %s12, 8
      %s19 = sphi 0, %s38
      %s20 = sphi 0, %s34
      %s21 = sphi 0, %s30
      %s22 = sphi 0, %s19
      %s23 = sphi 0, %s20
      %s24 = sphi 0, %s21
      %s25 = sphi 0, %s22
      %s26 = sphi 0, %s23
      %s27 = sphi 0, %s24
      %s43 = sphi 0, %s45
      %s46 = sphi 0, %s43
      %s47 = sphi 0, %s46
      %s63 = sphi 0, %s47
      %s71 = sphi 0, %s73
      %s74 = sphi 0, %s71
      %s75 = sphi 0, %s74
      %s91 = sphi 0, %s75
      %s97 = sphi 0, %s99
      %s100 = sphi 0, %s97
      %s101 = sphi 0, %s100
      %s117 = sphi 0, %s101
      %s125 = sphi 0, %s127
      %s128 = sphi 0, %s125
      %s129 = sphi 0, %s128
      %s145 = sphi 0, %s129
    $region4: #{transformer_ctc_forward.9} parent=1 // loop_header_branch
      %15 = sbr.rel (%p13) target = $region8
    $region5: #{transformer_ctc_forward.9} parent=1 // loop_body
      %s17 = ssub.s32 %s12, 1
      %s18 = ssub.s32 %s12, 2
      %s28 = sadd.s32 1, %s21
      %p29 = scmp.ge.s32.totalorder %s28, 1
      %s30 = scalar_select %p29, 0, %s28
      %s31 = sadd.s32 1, %s20
      %s32 = scalar_select %p29, %s31, %s20
      %p33 = scmp.ge.s32.totalorder %s32, 6
      %s34 = scalar_select %p33, 0, %s32
      %s35 = sadd.s32 1, %s19
      %s36 = scalar_select %p33, %s35, %s19
      %p37 = scmp.ge.s32.totalorder %s36, 1
      %s38 = scalar_select %p37, 0, %s36
      %s39 = ssub.s32 %s19, %s38
      %s40 = ssub.s32 %s21, %s30
      %s41 = sor.u32 %s39, %s40
      %p42 = scmp.eq.s32.totalorder %s41, 0
      %s44 = sadd.s32 %s43, 1
      %s45 = scalar_select %p42, %s43, %s44
      %p48 = pneg %p42
      %p49 = scmp.eq.s32.totalorder %s12, 5
      %p50 = por %p48, %p49
      %p51 = scmp.ne.s32.totalorder %s43, %s46
      %p52 = scmp.eq.s32.totalorder %s12, 0
      %p53 = por %p51, %p52
      %p54 = scmp.ne.s32.totalorder %s43, %s46
      %p55 = scmp.eq.s32.totalorder %s17, 5
      %p56 = por %p54, %p55
      %p57 = scmp.ne.s32.totalorder %s46, %s47
      %p58 = scmp.eq.s32.totalorder %s17, 0
      %p59 = por %p57, %p58
      %p60 = scmp.ne.s32.totalorder %s46, %s47
      %p61 = scmp.eq.s32.totalorder %s18, 5
      %p62 = por %p60, %p61
      %p64 = scmp.ne.s32.totalorder %s47, %s63
      %p65 = scmp.eq.s32.totalorder %s18, 0
      %p66 = por %p64, %p65
      %s67 = ssub.s32 %s21, %s30
      %s68 = ssub.s32 %s20, %s34
      %s69 = sor.u32 %s67, %s68
      %p70 = scmp.eq.s32.totalorder %s69, 0
      %s72 = sadd.s32 %s71, 1
      %s73 = scalar_select %p70, %s71, %s72
      %p76 = pneg %p70
      %p77 = scmp.eq.s32.totalorder %s12, 5
      %p78 = por %p76, %p77
      %p79 = scmp.ne.s32.totalorder %s71, %s74
      %p80 = scmp.eq.s32.totalorder %s12, 0
      %p81 = por %p79, %p80
      %p82 = scmp.ne.s32.totalorder %s71, %s74
      %p83 = scmp.eq.s32.totalorder %s17, 5
      %p84 = por %p82, %p83
      %p85 = scmp.ne.s32.totalorder %s74, %s75
      %p86 = scmp.eq.s32.totalorder %s17, 0
      %p87 = por %p85, %p86
      %p88 = scmp.ne.s32.totalorder %s74, %s75
      %p89 = scmp.eq.s32.totalorder %s18, 5
      %p90 = por %p88, %p89
      %p92 = scmp.ne.s32.totalorder %s75, %s91
      %p93 = scmp.eq.s32.totalorder %s18, 0
      %p94 = por %p92, %p93
      %s95 = ssub.s32 %s20, %s34
      %p96 = scmp.eq.s32.totalorder %s95, 0
      %s98 = sadd.s32 %s97, 1
      %s99 = scalar_select %p96, %s97, %s98
      %p102 = pneg %p96
      %p103 = scmp.eq.s32.totalorder %s12, 5
      %p104 = por %p102, %p103
      %p105 = scmp.ne.s32.totalorder %s97, %s100
      %p106 = scmp.eq.s32.totalorder %s12, 0
      %p107 = por %p105, %p106
      %p108 = scmp.ne.s32.totalorder %s97, %s100
      %p109 = scmp.eq.s32.totalorder %s17, 5
      %p110 = por %p108, %p109
      %p111 = scmp.ne.s32.totalorder %s100, %s101
      %p112 = scmp.eq.s32.totalorder %s17, 0
      %p113 = por %p111, %p112
      %p114 = scmp.ne.s32.totalorder %s100, %s101
      %p115 = scmp.eq.s32.totalorder %s18, 5
      %p116 = por %p114, %p115
      %p118 = scmp.ne.s32.totalorder %s101, %s117
      %p119 = scmp.eq.s32.totalorder %s18, 0
      %p120 = por %p118, %p119
      %s121 = ssub.s32 %s19, %s38
      %s122 = ssub.s32 %s20, %s34
      %s123 = sor.u32 %s121, %s122
      %p124 = scmp.eq.s32.totalorder %s123, 0
      %s126 = sadd.s32 %s125, 1
      %s127 = scalar_select %p124, %s125, %s126
      %p130 = pneg %p124
      %p131 = scmp.eq.s32.totalorder %s12, 5
      %p132 = por %p130, %p131
      %p133 = scmp.ne.s32.totalorder %s125, %s128
      %p134 = scmp.eq.s32.totalorder %s12, 0
      %p135 = por %p133, %p134
      %p136 = scmp.ne.s32.totalorder %s125, %s128
      %p137 = scmp.eq.s32.totalorder %s17, 5
      %p138 = por %p136, %p137
      %p139 = scmp.ne.s32.totalorder %s128, %s129
      %p140 = scmp.eq.s32.totalorder %s17, 0
      %p141 = por %p139, %p140
      %p142 = scmp.ne.s32.totalorder %s128, %s129
      %p143 = scmp.eq.s32.totalorder %s18, 5
      %p144 = por %p142, %p143
      %p146 = scmp.ne.s32.totalorder %s129, %s145
      %p147 = scmp.eq.s32.totalorder %s18, 0
      %p148 = por %p146, %p147
      %p149 = scmp.le.s32.totalorder 1, %s12
      %p150 = scmp.lt.s32.totalorder %s12, 7
      %p151 = pnand %p149, %p150
      %p152 = pneg %p151
      // Predicated region
      $region9: #{transformer_ctc_forward.9} parent=5 // pred_check
        _
      $region10: #{transformer_ctc_forward.9} parent=5 // pred_check_branch
        %154 = sbr.rel (%p151) target = $region12
      $region11: #{transformer_ctc_forward.9} parent=5 // pred_region
        %s155 = ssub.s32 %s12, 1
        // Predicated region
        $region13: #{transformer_ctc_forward.9} parent=11 // pred_check
          %p156 = pneg %p59
        $region14: #{transformer_ctc_forward.9} parent=11 // pred_check_branch
          %158 = sbr.rel (%p156) target = $region16
        $region15: #{transformer_ctc_forward.9} parent=11 // pred_region
          %s159 = smul.u32 2, %s22
          %p160 = scmp.lt.s32.totalorder %s159, 1
          %s161 = scalar_select %p160, %s159, 1
          %p162 = scmp.lt.s32.totalorder %s24, 0
          %s163 = scalar_select %p162, %s24, 0
          %s164 = sadd.s32 %s163, %s161
          %s165 = smul.addr %s164, 8
          %s166 = scalar_lea.vmem %s0, %s165
          %s167 = smul.u32 2, %s22
        $region16: #{transformer_ctc_forward.9} parent=11 // pred_fallthru
          _
      $region12: #{transformer_ctc_forward.9} parent=5 // pred_fallthru
        _
      %p168 = scmp.lt.s32.totalorder %s12, 6
      // Predicated region
      $region17: #{transformer_ctc_forward.9} parent=5 // pred_check
        %p169 = pneg %p168
      $region18: #{transformer_ctc_forward.9} parent=5 // pred_check_branch
        %171 = sbr.rel (%p169) target = $region20
      $region19: #{transformer_ctc_forward.9} parent=5 // pred_region
        // Predicated region
        $region21: #{transformer_ctc_forward.9} parent=19 // pred_check
          %p172 = pneg %p81
        $region22: #{transformer_ctc_forward.9} parent=19 // pred_check_branch
          %174 = sbr.rel (%p172) target = $region24
        $region23: #{transformer_ctc_forward.9} parent=19 // pred_region
          %s175 = sand.u32 %s71, 1
          %s176 = scalar_lea.sflag [#allocation4], %s175
          %s177 = sand.u32 %s71, 1
          %s178 = smul.addr %s177, 256
          %s179 = scalar_lea.vmem [#allocation3], %s178
          %s180 = smul.u32 16, %s21
          %s181 = smul.u32 2, %s20
          %183 = vsyncadd %s176, 0
          %s184 = smul.addr %s180, 12
          %s185 = sadd.s32 %s181, %s184
          %s186 = smul.addr %s185, 8
          %s187 = scalar_lea.hbm %s1, %s186
          %s188 = sshll.u32 %s187, 4
          %s189 = int_to_ptr.hbm [resolvable:$true] %s188
          %s190 = sshll.u32 %s179, 4
          %s191 = int_to_ptr.vmem [resolvable:$true] %s190
          %196 = dma.hbm_to_vmem [thread:$0]  %s189, 4096, %s191, %s176, 1536, 256, 16
        $region24: #{transformer_ctc_forward.9} parent=19 // pred_fallthru
          _
        // Predicated region
        $region25: #{transformer_ctc_forward.9} parent=19 // pred_check
          %p197 = pneg %p107
        $region26: #{transformer_ctc_forward.9} parent=19 // pred_check_branch
          %199 = sbr.rel (%p197) target = $region28
        $region27: #{transformer_ctc_forward.9} parent=19 // pred_region
          %s200 = smul.u32 2, %s20
          %p201 = scmp.lt.s32.totalorder %s200, 11
          %s202 = scalar_select %p201, %s200, 11
          %s203 = scalar_lea.vmem %s2, %s202
          %s204 = smul.u32 2, %s20
        $region28: #{transformer_ctc_forward.9} parent=19 // pred_fallthru
          _
      $region20: #{transformer_ctc_forward.9} parent=5 // pred_fallthru
        _
      %p205 = scmp.le.s32.totalorder 1, %s12
      %p206 = scmp.lt.s32.totalorder %s12, 7
      %p207 = pnand %p205, %p206
      %p208 = pneg %p207
      // Predicated region
      $region29: #{transformer_ctc_forward.9} parent=5 // pred_check
        _
      $region30: #{transformer_ctc_forward.9} parent=5 // pred_check_branch
        %210 = sbr.rel (%p207) target = $region32
      $region31: #{transformer_ctc_forward.9} parent=5 // pred_region
        %s211 = ssub.s32 %s12, 1
        %s212 = sand.u32 %s74, 1
        %s213 = scalar_lea.sflag [#allocation4], %s212
        %s214 = sand.u32 %s74, 1
        %s215 = smul.addr %s214, 256
        %s216 = scalar_lea.vmem [#allocation3], %s215
        // Predicated region
        $region33: #{transformer_ctc_forward.9} parent=31 // pred_check
          %p217 = pneg %p87
        $region34: #{transformer_ctc_forward.9} parent=31 // pred_check_branch
          %219 = sbr.rel (%p217) target = $region36
        $region35: #{transformer_ctc_forward.9} parent=31 // pred_region
          %221 = dma.done %s213, 4096
        $region36: #{transformer_ctc_forward.9} parent=31 // pred_fallthru
          _
        %s222 = smul.u32 2, %s22
        %p223 = scmp.lt.s32.totalorder %s222, 1
        %s224 = scalar_select %p223, %s222, 1
        %p225 = scmp.lt.s32.totalorder %s24, 0
        %s226 = scalar_select %p225, %s24, 0
        %s227 = sadd.s32 %s226, %s224
        %s228 = smul.addr %s227, 8
        %s229 = scalar_lea.vmem %s0, %s228
        %p230 = pneg %p59
        %p231 = pneg %p56
        %s232 = sand.u32 %s74, 1
        %s233 = scalar_lea.sflag [#allocation4], %s232
        %s234 = sand.u32 %s74, 1
        %s235 = smul.addr %s234, 256
        %s236 = scalar_lea.vmem [#allocation3], %s235
        %p237 = pneg %p87
        %p238 = pneg %p84
        %s239 = smul.u32 2, %s23
        %p240 = scmp.lt.s32.totalorder %s239, 11
        %s241 = scalar_select %p240, %s239, 11
        %s242 = scalar_lea.vmem %s2, %s241
        %p243 = pneg %p113
        %p244 = pneg %p110
        %p245 = pneg %p141
        %p246 = pneg %p138
        %s247 = sand.u32 %s128, 1
        %s248 = sand.u32 %s128, 1
        %s249 = smul.addr %s248, 32
        %s250 = scalar_lea.vmem [#allocation5], %s249
        %s251 = smul.u32 2, %s22
        %p252 = scmp.lt.s32.totalorder %s251, 1
        %s253 = scalar_select %p252, %s251, 1
        %p254 = scmp.lt.s32.totalorder %s24, 0
        %s255 = scalar_select %p254, %s24, 0
        %s256 = sadd.s32 %s255, %s253
        %s257 = smul.addr %s256, 8
        %s258 = scalar_lea.vmem %s0, %s257
        %s259 = smul.u32 2, %s22
        %s260 = smul.u32 16, %s24
        %s261 = smul.u32 2, %s23
        %s262 = smul.u32 2, %s23
        %p263 = scmp.lt.s32.totalorder %s262, 11
        %s264 = scalar_select %p263, %s262, 11
        %s265 = scalar_lea.vmem %s2, %s264
        %s266 = smul.u32 2, %s23
        %s267 = smul.u32 2, %s22
        %s268 = smul.u32 2, %s23
        %p269 = scmp.eq.s32.totalorder %s24, 0
        // Predicated region
        $region37: #{transformer_ctc_forward.9} parent=31 // pred_check
          %p270 = pneg %p269
        $region38: #{transformer_ctc_forward.9} parent=31 // pred_check_branch
          %272 = sbr.rel (%p270) target = $region40
        $region39: #{transformer_ctc_forward.9} parent=31 // pred_region
          %273 = vst [vmem:[#allocation2] sm:$0xff] 0.0
          %274 = vst [vmem:[#allocation2 + $0x8] sm:$0xff] 0.0
          %275 = vst [vmem:[#allocation2 + $0x10] sm:$0xff] 0.0
          %276 = vst [vmem:[#allocation2 + $0x18] sm:$0xff] 0.0
        $region40: #{transformer_ctc_forward.9} parent=31 // pred_fallthru
          _
        %v277 = vld [vmem:[#allocation2] sm:$0xff]
        %v278 = vld [vmem:[#allocation2 + $0x8] sm:$0xff]
        %v279 = vld [vmem:[#allocation2 + $0x10] sm:$0xff]
        %v280 = vld [vmem:[#allocation2 + $0x18] sm:$0xff]
        %v281 = vld [vmem:[%s258] sm:$0xff]
        %v282 = vld [vmem:[%s258 + $0x8] sm:$0xff]
        %v283 = vld [vmem:[%s216] sm:$0xff]
        %v284 = vld [vmem:[%s216 + $0x8] sm:$0xff]
        %v285 = vld [vmem:[%s216 + $0x10] sm:$0xff]
        %v286 = vld [vmem:[%s216 + $0x18] sm:$0xff]
        %v287 = vld [vmem:[%s216 + $0x20] sm:$0xff]
        %v288 = vld [vmem:[%s216 + $0x28] sm:$0xff]
        %v289 = vld [vmem:[%s216 + $0x30] sm:$0xff]
        %v290 = vld [vmem:[%s216 + $0x38] sm:$0xff]
        %v291 = vld [vmem:[%s216 + $0x40] sm:$0xff]
        %v292 = vld [vmem:[%s216 + $0x48] sm:$0xff]
        %v293 = vld [vmem:[%s216 + $0x50] sm:$0xff]
        %v294 = vld [vmem:[%s216 + $0x58] sm:$0xff]
        %v295 = vld [vmem:[%s216 + $0x60] sm:$0xff]
        %v296 = vld [vmem:[%s216 + $0x68] sm:$0xff]
        %v297 = vld [vmem:[%s216 + $0x70] sm:$0xff]
        %v298 = vld [vmem:[%s216 + $0x78] sm:$0xff]
        %v299 = vld [vmem:[%s216 + $0x80] sm:$0xff]
        %v300 = vld [vmem:[%s216 + $0x88] sm:$0xff]
        %v301 = vld [vmem:[%s216 + $0x90] sm:$0xff]
        %v302 = vld [vmem:[%s216 + $0x98] sm:$0xff]
        %v303 = vld [vmem:[%s216 + $0xa0] sm:$0xff]
        %v304 = vld [vmem:[%s216 + $0xa8] sm:$0xff]
        %v305 = vld [vmem:[%s216 + $0xb0] sm:$0xff]
        %v306 = vld [vmem:[%s216 + $0xb8] sm:$0xff]
        %v307 = vld [vmem:[%s216 + $0xc0] sm:$0xff]
        %v308 = vld [vmem:[%s216 + $0xc8] sm:$0xff]
        %v309 = vld [vmem:[%s216 + $0xd0] sm:$0xff]
        %v310 = vld [vmem:[%s216 + $0xd8] sm:$0xff]
        %v311 = vld [vmem:[%s216 + $0xe0] sm:$0xff]
        %v312 = vld [vmem:[%s216 + $0xe8] sm:$0xff]
        %v313 = vld [vmem:[%s216 + $0xf0] sm:$0xff]
        %v314 = vld [vmem:[%s216 + $0xf8] sm:$0xff]
        %315 = vmatpush.msra.mxu0 %v313
        %316 = vmatpush.msra.mxu0 %v311
        %317 = vmatpush.msra.mxu0 %v309
        %318 = vmatpush.msra.mxu0 %v307
        %319 = vmatpush.msra.mxu0 %v305
        %320 = vmatpush.msra.mxu0 %v303
        %321 = vmatpush.msra.mxu0 %v301
        %322 = vmatpush.msra.mxu0 %v299
        %323 = vmatpush.msra.mxu0 %v297
        %324 = vmatpush.msra.mxu0 %v295
        %325 = vmatpush.msra.mxu0 %v293
        %326 = vmatpush.msra.mxu0 %v291
        %327 = vmatpush.msra.mxu0 %v289
        %328 = vmatpush.msra.mxu0 %v287
        %329 = vmatpush.msra.mxu0 %v285
        %330 = vmatpush.msra.mxu0 %v283
        %331 = vmatmul.f32.gmra.mxu0 %v281
        %v332 = vpop.f32.mrf.mxu0
        %v333 = vadd.f32 0.0, %v332
        %334 = vmatmul.f32.gmra.mxu0 %v282
        %v335 = vpop.f32.mrf.mxu0
        %v336 = vadd.f32 0.0, %v335
        %337 = vdwg.mxu0
        %338 = vmatpush.msra.mxu0 %v314
        %339 = vmatpush.msra.mxu0 %v312
        %340 = vmatpush.msra.mxu0 %v310
        %341 = vmatpush.msra.mxu0 %v308
        %342 = vmatpush.msra.mxu0 %v306
        %343 = vmatpush.msra.mxu0 %v304
        %344 = vmatpush.msra.mxu0 %v302
        %345 = vmatpush.msra.mxu0 %v300
        %346 = vmatpush.msra.mxu0 %v298
        %347 = vmatpush.msra.mxu0 %v296
        %348 = vmatpush.msra.mxu0 %v294
        %349 = vmatpush.msra.mxu0 %v292
        %350 = vmatpush.msra.mxu0 %v290
        %351 = vmatpush.msra.mxu0 %v288
        %352 = vmatpush.msra.mxu0 %v286
        %353 = vmatpush.msra.mxu0 %v284
        %354 = vmatmul.f32.gmra.mxu0 %v281
        %v355 = vpop.f32.mrf.mxu0
        %v356 = vadd.f32 0.0, %v355
        %357 = vmatmul.f32.gmra.mxu0 %v282
        %v358 = vpop.f32.mrf.mxu0
        %v359 = vadd.f32 0.0, %v358
        %360 = vdwg.mxu0
        %v361 = vadd.f32 %v277, %v333
        %v362 = vadd.f32 %v278, %v356
        %v363 = vadd.f32 %v279, %v336
        %v364 = vadd.f32 %v280, %v359
        %365 = vst [vmem:[#allocation2] sm:$0xff] %v361
        %366 = vst [vmem:[#allocation2 + $0x8] sm:$0xff] %v362
        %367 = vst [vmem:[#allocation2 + $0x10] sm:$0xff] %v363
        %368 = vst [vmem:[#allocation2 + $0x18] sm:$0xff] %v364
        // Predicated region
        $region41: #{transformer_ctc_forward.9} parent=31 // pred_check
          %p369 = pneg %p269
        $region42: #{transformer_ctc_forward.9} parent=31 // pred_check_branch
          %371 = sbr.rel (%p369) target = $region44
        $region43: #{transformer_ctc_forward.9} parent=31 // pred_region
          %v372 = vld [vmem:[#allocation2] sm:$0xff]
          %v373 = vld [vmem:[#allocation2 + $0x8] sm:$0xff]
          %v374 = vld [vmem:[#allocation2 + $0x10] sm:$0xff]
          %v375 = vld [vmem:[#allocation2 + $0x18] sm:$0xff]
          %v376 = vld [vmem:[%s265] sm:$0x3]
          %v378 = vperm.slane %v376, 0
          %v379 = vperm.slane %v376, 1
          %v382 = vadd.f32 %v372, %v378
          %v383 = vadd.f32 %v373, %v379
          %v384 = vadd.f32 %v374, %v378
          %v385 = vadd.f32 %v375, %v379
          %386 = vst [vmem:[%s250] sm:$0xff] %v382
          %387 = vst [vmem:[%s250 + $0x8] sm:$0xff] %v383
          %388 = vst [vmem:[%s250 + $0x10] sm:$0xff] %v384
          %389 = vst [vmem:[%s250 + $0x18] sm:$0xff] %v385
        $region44: #{transformer_ctc_forward.9} parent=31 // pred_fallthru
          _
        %s390 = sand.u32 %s128, 1
        %s391 = sand.u32 %s128, 1
        %s392 = smul.addr %s391, 32
        %s393 = scalar_lea.vmem [#allocation5], %s392
        // Predicated region
        $region45: #{transformer_ctc_forward.9} parent=31 // pred_check
          %p394 = pneg %p138
        $region46: #{transformer_ctc_forward.9} parent=31 // pred_check_branch
          %396 = sbr.rel (%p394) target = $region48
        $region47: #{transformer_ctc_forward.9} parent=31 // pred_region
          %s397 = smul.u32 2, %s22
          %s398 = smul.u32 2, %s23
          %s399 = smul.addr %s397, 12
          %s400 = sadd.s32 %s398, %s399
          %s401 = smul.addr %s400, 8
          %s402 = scalar_lea.vmem %s3, %s401
          // Predicated region
          $region49: #{transformer_ctc_forward.9} parent=47 // pred_check
            _
          $region50: #{transformer_ctc_forward.9} parent=47 // pred_check_branch
            %404 = sbr.rel (0) target = $region52
          $region51: #{transformer_ctc_forward.9} parent=47 // pred_region
            // Predicated region
            $region53: #{transformer_ctc_forward.9} parent=51 // pred_check
              _
            $region54: #{transformer_ctc_forward.9} parent=51 // pred_check_branch
              %406 = sbr.rel (0) target = $region56
            $region55: #{transformer_ctc_forward.9} parent=51 // pred_region
              loop: start=0, step=1, limit=1
              $region57: #{transformer_ctc_forward.9} parent=55 // loop_pre_header
                _
              $region58: #{transformer_ctc_forward.9} parent=55 // loop_header
                %s408 = sphi 0, %s412
                %p409 = scmp.ge.s32.totalorder %s408, 1
                %s413 = sphi %s393, %s393
                %s414 = sphi %s402, %s402
              $region59: #{transformer_ctc_forward.9} parent=55 // loop_header_branch
                %411 = sbr.rel (%p409) target = $region63
              $region60: #{transformer_ctc_forward.9} parent=55 // loop_body
                %v415 = vld [vmem:[%s413] sm:$0xff]
                %416 = vst [vmem:[%s414] sm:$0xff] %v415
                %v417 = vld [vmem:[%s413 + $0x8] sm:$0xff]
                %418 = vst [vmem:[%s414 + $0x8] sm:$0xff] %v417
                %v419 = vld [vmem:[%s413 + $0x10] sm:$0xff]
                %420 = vst [vmem:[%s414 + $0x60] sm:$0xff] %v419
                %v421 = vld [vmem:[%s413 + $0x18] sm:$0xff]
                %422 = vst [vmem:[%s414 + $0x68] sm:$0xff] %v421
              $region61: #{transformer_ctc_forward.9} parent=55 // loop_footer
                %s412 = sadd.s32 1, %s408
              $region62: #{transformer_ctc_forward.9} parent=55 // loop_footer_branch
                %407 = sbr.rel target = $region58
              $region63: #{transformer_ctc_forward.9} parent=55 // loop_exit
                _
            $region56: #{transformer_ctc_forward.9} parent=51 // pred_fallthru
              _
            // Predicated region
            $region64: #{transformer_ctc_forward.9} parent=51 // pred_check
              _
            $region65: #{transformer_ctc_forward.9} parent=51 // pred_check_branch
              %424 = sbr.rel target = $region67
            $region66: #{transformer_ctc_forward.9} parent=51 // pred_region
              _
            $region67: #{transformer_ctc_forward.9} parent=51 // pred_fallthru
              _
          $region52: #{transformer_ctc_forward.9} parent=47 // pred_fallthru
            _
          %425 = vnop
        $region48: #{transformer_ctc_forward.9} parent=31 // pred_fallthru
          _
      $region32: #{transformer_ctc_forward.9} parent=5 // pred_fallthru
        _
      %p426 = scmp.le.s32.totalorder 2, %s12
      // Predicated region
      $region68: #{transformer_ctc_forward.9} parent=5 // pred_check
        %p427 = pneg %p426
      $region69: #{transformer_ctc_forward.9} parent=5 // pred_check_branch
        %429 = sbr.rel (%p427) target = $region71
      $region70: #{transformer_ctc_forward.9} parent=5 // pred_region
        %s430 = ssub.s32 %s12, 2
        // Predicated region
        $region72: #{transformer_ctc_forward.9} parent=70 // pred_check
          %p431 = pneg %p144
        $region73: #{transformer_ctc_forward.9} parent=70 // pred_check_branch
          %433 = sbr.rel (%p431) target = $region75
        $region74: #{transformer_ctc_forward.9} parent=70 // pred_region
          %s434 = sand.u32 %s129, 1
          %s435 = sand.u32 %s129, 1
          %s436 = smul.addr %s435, 32
          %s437 = scalar_lea.vmem [#allocation5], %s436
        $region75: #{transformer_ctc_forward.9} parent=70 // pred_fallthru
          _
      $region71: #{transformer_ctc_forward.9} parent=5 // pred_fallthru
        _
    $region6: #{transformer_ctc_forward.9} parent=1 // loop_footer
      %s16 = sadd.s32 1, %s12
    $region7: #{transformer_ctc_forward.9} parent=1 // loop_footer_branch
      %11 = sbr.rel target = $region3
    $region8: #{transformer_ctc_forward.9} parent=1 // loop_exit
      _
    %438 = vsyncpa [#allocation4], 1
    %s439 = scalar_lea.sflag [#allocation4], 1
    %440 = vsyncpa %s439, 1

// kernel: transformer_ctc_forward.10
$region0: #{transformer_ctc_forward.10}
  #allocation0 [shape = 'u32[]', space=smem, size = 0x4, offset = 0x4, fixed_abs, tag = 'smem constant byte address 0x4 - core index']
  #allocation1 [shape = 'u32[72,128]{1,0:T(1,128)}', space=vmem, size = 0x9000, scoped, tag = 'internal scratch']
  #allocation2 [shape = 'f32[8,128]{1,0:T(8,128)}', space=vmem, size = 0x1000, scoped, tag = 'scratch operand']
  %s0 = inlined_call_operand.vmem [shape: f32[2,8,1536], index: 0, kind: input, shape index: {}, may-alias: {0,1,2}]
  %s1 = inlined_call_operand.vmem [shape: f32[2,8,1536], index: 1, kind: input, shape index: {}, may-alias: {0,1,2}]
  %s2 = inlined_call_operand.vmem [shape: f32[2,8,1536], index: 2, kind: input, shape index: {}, may-alias: {0,1,2}]
  %s3 = inlined_call_operand.hbm [shape: f32[512,128], index: 3, kind: input, shape index: {}]
  %s4 = inlined_call_operand.vmem [shape: f32[1,128], index: 4, kind: input, shape index: {}]
  %s5 = inlined_call_operand.vmem [shape: f32[2,8,128], index: 5, kind: input, shape index: {}, may-alias: {5,8}]
  %s6 = inlined_call_operand.vmem [shape: f32[1,128], index: 6, kind: input, shape index: {}]
  %s7 = inlined_call_operand.vmem [shape: f32[1,128], index: 7, kind: input, shape index: {}]
  %s8 = inlined_call_operand.vmem [shape: f32[2,8,128], index: 8, kind: output, shape index: {}, may-alias: {5,8}]
  %s9 = sld [smem:[#allocation0]]
  $region77: #{transformer_ctc_forward.10} parent=0
    _
  %s11 = ssub.s32 1, %s9
  %s12 = scalar_select 0, %s11, %s9
  $region1: #{transformer_ctc_forward.10} parent=0
    #allocation3 [shape = 'u8[131072]{0}', space=vmem, size = 0x20000, scoped, tag = 'input window, operand 3']
    #allocation4 [shape = 's32[2]{0}', space=sflag, size = 0x8, scoped, tag = 'scoped memory for transformer_ctc_forward.10']
    %13 = vsyncpa [#allocation4], 0
    %s14 = scalar_lea.sflag [#allocation4], 1
    %15 = vsyncpa %s14, 0
    loop: start=0, step=1, limit=10
    $region2: #{transformer_ctc_forward.10} parent=1 // loop_pre_header
      _
    $region3: #{transformer_ctc_forward.10} parent=1 // loop_header
      %s17 = sphi 0, %s21
      %p18 = scmp.ge.s32.totalorder %s17, 10
      %s24 = sphi 0, %s36
      %s25 = sphi 0, %s32
      %s26 = sphi 0, %s24
      %s27 = sphi 0, %s25
      %s28 = sphi 0, %s26
      %s29 = sphi 0, %s27
      %s41 = sphi 0, %s43
      %s44 = sphi 0, %s41
      %s45 = sphi 0, %s44
      %s61 = sphi 0, %s45
      %s71 = sphi 0, %s73
      %s74 = sphi 0, %s71
      %s75 = sphi 0, %s74
      %s91 = sphi 0, %s75
      %s101 = sphi 0, %s103
      %s104 = sphi 0, %s101
      %s105 = sphi 0, %s104
      %s121 = sphi 0, %s105
      %s127 = sphi 0, %s129
      %s130 = sphi 0, %s127
      %s131 = sphi 0, %s130
      %s147 = sphi 0, %s131
      %s151 = sphi 0, %s151
      %s153 = sphi 0, %s151
      %s154 = sphi 0, %s153
      %s168 = sphi 0, %s154
      %s174 = sphi 0, %s176
      %s177 = sphi 0, %s174
      %s178 = sphi 0, %s177
      %s194 = sphi 0, %s178
      %s198 = sphi 0, %s198
      %s200 = sphi 0, %s198
      %s201 = sphi 0, %s200
      %s215 = sphi 0, %s201
      %s219 = sphi 0, %s219
      %s221 = sphi 0, %s219
      %s222 = sphi 0, %s221
      %s236 = sphi 0, %s222
      %s242 = sphi 0, %s244
      %s245 = sphi 0, %s242
      %s246 = sphi 0, %s245
      %s262 = sphi 0, %s246
    $region4: #{transformer_ctc_forward.10} parent=1 // loop_header_branch
      %20 = sbr.rel (%p18) target = $region8
    $region5: #{transformer_ctc_forward.10} parent=1 // loop_body
      %s22 = ssub.s32 %s17, 1
      %s23 = ssub.s32 %s17, 2
      %s30 = sadd.s32 1, %s25
      %p31 = scmp.ge.s32.totalorder %s30, 4
      %s32 = scalar_select %p31, 0, %s30
      %s33 = sadd.s32 1, %s24
      %s34 = scalar_select %p31, %s33, %s24
      %p35 = scmp.ge.s32.totalorder %s34, 2
      %s36 = scalar_select %p35, 0, %s34
      %s37 = ssub.s32 %s24, %s36
      %s38 = ssub.s32 %s25, %s32
      %s39 = sor.u32 %s37, %s38
      %p40 = scmp.eq.s32.totalorder %s39, 0
      %s42 = sadd.s32 %s41, 1
      %s43 = scalar_select %p40, %s41, %s42
      %p46 = pneg %p40
      %p47 = scmp.eq.s32.totalorder %s17, 7
      %p48 = por %p46, %p47
      %p49 = scmp.ne.s32.totalorder %s41, %s44
      %p50 = scmp.eq.s32.totalorder %s17, 0
      %p51 = por %p49, %p50
      %p52 = scmp.ne.s32.totalorder %s41, %s44
      %p53 = scmp.eq.s32.totalorder %s22, 7
      %p54 = por %p52, %p53
      %p55 = scmp.ne.s32.totalorder %s44, %s45
      %p56 = scmp.eq.s32.totalorder %s22, 0
      %p57 = por %p55, %p56
      %p58 = scmp.ne.s32.totalorder %s44, %s45
      %p59 = scmp.eq.s32.totalorder %s23, 7
      %p60 = por %p58, %p59
      %p62 = scmp.ne.s32.totalorder %s45, %s61
      %p63 = scmp.eq.s32.totalorder %s23, 0
      %p64 = por %p62, %p63
      %s65 = sadd.s32 %s25, 4
      %s66 = sadd.s32 %s32, 4
      %s67 = ssub.s32 %s24, %s36
      %s68 = ssub.s32 %s65, %s66
      %s69 = sor.u32 %s67, %s68
      %p70 = scmp.eq.s32.totalorder %s69, 0
      %s72 = sadd.s32 %s71, 1
      %s73 = scalar_select %p70, %s71, %s72
      %p76 = pneg %p70
      %p77 = scmp.eq.s32.totalorder %s17, 7
      %p78 = por %p76, %p77
      %p79 = scmp.ne.s32.totalorder %s71, %s74
      %p80 = scmp.eq.s32.totalorder %s17, 0
      %p81 = por %p79, %p80
      %p82 = scmp.ne.s32.totalorder %s71, %s74
      %p83 = scmp.eq.s32.totalorder %s22, 7
      %p84 = por %p82, %p83
      %p85 = scmp.ne.s32.totalorder %s74, %s75
      %p86 = scmp.eq.s32.totalorder %s22, 0
      %p87 = por %p85, %p86
      %p88 = scmp.ne.s32.totalorder %s74, %s75
      %p89 = scmp.eq.s32.totalorder %s23, 7
      %p90 = por %p88, %p89
      %p92 = scmp.ne.s32.totalorder %s75, %s91
      %p93 = scmp.eq.s32.totalorder %s23, 0
      %p94 = por %p92, %p93
      %s95 = sadd.s32 %s25, 8
      %s96 = sadd.s32 %s32, 8
      %s97 = ssub.s32 %s24, %s36
      %s98 = ssub.s32 %s95, %s96
      %s99 = sor.u32 %s97, %s98
      %p100 = scmp.eq.s32.totalorder %s99, 0
      %s102 = sadd.s32 %s101, 1
      %s103 = scalar_select %p100, %s101, %s102
      %p106 = pneg %p100
      %p107 = scmp.eq.s32.totalorder %s17, 7
      %p108 = por %p106, %p107
      %p109 = scmp.ne.s32.totalorder %s101, %s104
      %p110 = scmp.eq.s32.totalorder %s17, 0
      %p111 = por %p109, %p110
      %p112 = scmp.ne.s32.totalorder %s101, %s104
      %p113 = scmp.eq.s32.totalorder %s22, 7
      %p114 = por %p112, %p113
      %p115 = scmp.ne.s32.totalorder %s104, %s105
      %p116 = scmp.eq.s32.totalorder %s22, 0
      %p117 = por %p115, %p116
      %p118 = scmp.ne.s32.totalorder %s104, %s105
      %p119 = scmp.eq.s32.totalorder %s23, 7
      %p120 = por %p118, %p119
      %p122 = scmp.ne.s32.totalorder %s105, %s121
      %p123 = scmp.eq.s32.totalorder %s23, 0
      %p124 = por %p122, %p123
      %s125 = ssub.s32 %s25, %s32
      %p126 = scmp.eq.s32.totalorder %s125, 0
      %s128 = sadd.s32 %s127, 1
      %s129 = scalar_select %p126, %s127, %s128
      %p132 = pneg %p126
      %p133 = scmp.eq.s32.totalorder %s17, 7
      %p134 = por %p132, %p133
      %p135 = scmp.ne.s32.totalorder %s127, %s130
      %p136 = scmp.eq.s32.totalorder %s17, 0
      %p137 = por %p135, %p136
      %p138 = scmp.ne.s32.totalorder %s127, %s130
      %p139 = scmp.eq.s32.totalorder %s22, 7
      %p140 = por %p138, %p139
      %p141 = scmp.ne.s32.totalorder %s130, %s131
      %p142 = scmp.eq.s32.totalorder %s22, 0
      %p143 = por %p141, %p142
      %p144 = scmp.ne.s32.totalorder %s130, %s131
      %p145 = scmp.eq.s32.totalorder %s23, 7
      %p146 = por %p144, %p145
      %p148 = scmp.ne.s32.totalorder %s131, %s147
      %p149 = scmp.eq.s32.totalorder %s23, 0
      %p150 = por %p148, %p149
      %s152 = sadd.s32 %s151, 1
      %p155 = scmp.eq.s32.totalorder %s17, 7
      %p156 = scmp.ne.s32.totalorder %s151, %s153
      %p157 = scmp.eq.s32.totalorder %s17, 0
      %p158 = por %p156, %p157
      %p159 = scmp.ne.s32.totalorder %s151, %s153
      %p160 = scmp.eq.s32.totalorder %s22, 7
      %p161 = por %p159, %p160
      %p162 = scmp.ne.s32.totalorder %s153, %s154
      %p163 = scmp.eq.s32.totalorder %s22, 0
      %p164 = por %p162, %p163
      %p165 = scmp.ne.s32.totalorder %s153, %s154
      %p166 = scmp.eq.s32.totalorder %s23, 7
      %p167 = por %p165, %p166
      %p169 = scmp.ne.s32.totalorder %s154, %s168
      %p170 = scmp.eq.s32.totalorder %s23, 0
      %p171 = por %p169, %p170
      %s172 = ssub.s32 %s24, %s36
      %p173 = scmp.eq.s32.totalorder %s172, 0
      %s175 = sadd.s32 %s174, 1
      %s176 = scalar_select %p173, %s174, %s175
      %p179 = pneg %p173
      %p180 = scmp.eq.s32.totalorder %s17, 7
      %p181 = por %p179, %p180
      %p182 = scmp.ne.s32.totalorder %s174, %s177
      %p183 = scmp.eq.s32.totalorder %s17, 0
      %p184 = por %p182, %p183
      %p185 = scmp.ne.s32.totalorder %s174, %s177
      %p186 = scmp.eq.s32.totalorder %s22, 7
      %p187 = por %p185, %p186
      %p188 = scmp.ne.s32.totalorder %s177, %s178
      %p189 = scmp.eq.s32.totalorder %s22, 0
      %p190 = por %p188, %p189
      %p191 = scmp.ne.s32.totalorder %s177, %s178
      %p192 = scmp.eq.s32.totalorder %s23, 7
      %p193 = por %p191, %p192
      %p195 = scmp.ne.s32.totalorder %s178, %s194
      %p196 = scmp.eq.s32.totalorder %s23, 0
      %p197 = por %p195, %p196
      %s199 = sadd.s32 %s198, 1
      %p202 = scmp.eq.s32.totalorder %s17, 7
      %p203 = scmp.ne.s32.totalorder %s198, %s200
      %p204 = scmp.eq.s32.totalorder %s17, 0
      %p205 = por %p203, %p204
      %p206 = scmp.ne.s32.totalorder %s198, %s200
      %p207 = scmp.eq.s32.totalorder %s22, 7
      %p208 = por %p206, %p207
      %p209 = scmp.ne.s32.totalorder %s200, %s201
      %p210 = scmp.eq.s32.totalorder %s22, 0
      %p211 = por %p209, %p210
      %p212 = scmp.ne.s32.totalorder %s200, %s201
      %p213 = scmp.eq.s32.totalorder %s23, 7
      %p214 = por %p212, %p213
      %p216 = scmp.ne.s32.totalorder %s201, %s215
      %p217 = scmp.eq.s32.totalorder %s23, 0
      %p218 = por %p216, %p217
      %s220 = sadd.s32 %s219, 1
      %p223 = scmp.eq.s32.totalorder %s17, 7
      %p224 = scmp.ne.s32.totalorder %s219, %s221
      %p225 = scmp.eq.s32.totalorder %s17, 0
      %p226 = por %p224, %p225
      %p227 = scmp.ne.s32.totalorder %s219, %s221
      %p228 = scmp.eq.s32.totalorder %s22, 7
      %p229 = por %p227, %p228
      %p230 = scmp.ne.s32.totalorder %s221, %s222
      %p231 = scmp.eq.s32.totalorder %s22, 0
      %p232 = por %p230, %p231
      %p233 = scmp.ne.s32.totalorder %s221, %s222
      %p234 = scmp.eq.s32.totalorder %s23, 7
      %p235 = por %p233, %p234
      %p237 = scmp.ne.s32.totalorder %s222, %s236
      %p238 = scmp.eq.s32.totalorder %s23, 0
      %p239 = por %p237, %p238
      %s240 = ssub.s32 %s24, %s36
      %p241 = scmp.eq.s32.totalorder %s240, 0
      %s243 = sadd.s32 %s242, 1
      %s244 = scalar_select %p241, %s242, %s243
      %p247 = pneg %p241
      %p248 = scmp.eq.s32.totalorder %s17, 7
      %p249 = por %p247, %p248
      %p250 = scmp.ne.s32.totalorder %s242, %s245
      %p251 = scmp.eq.s32.totalorder %s17, 0
      %p252 = por %p250, %p251
      %p253 = scmp.ne.s32.totalorder %s242, %s245
      %p254 = scmp.eq.s32.totalorder %s22, 7
      %p255 = por %p253, %p254
      %p256 = scmp.ne.s32.totalorder %s245, %s246
      %p257 = scmp.eq.s32.totalorder %s22, 0
      %p258 = por %p256, %p257
      %p259 = scmp.ne.s32.totalorder %s245, %s246
      %p260 = scmp.eq.s32.totalorder %s23, 7
      %p261 = por %p259, %p260
      %p263 = scmp.ne.s32.totalorder %s246, %s262
      %p264 = scmp.eq.s32.totalorder %s23, 0
      %p265 = por %p263, %p264
      %p266 = scmp.le.s32.totalorder 1, %s17
      %p267 = scmp.lt.s32.totalorder %s17, 9
      %p268 = pnand %p266, %p267
      %p269 = pneg %p268
      // Predicated region
      $region9: #{transformer_ctc_forward.10} parent=5 // pred_check
        _
      $region10: #{transformer_ctc_forward.10} parent=5 // pred_check_branch
        %271 = sbr.rel (%p268) target = $region12
      $region11: #{transformer_ctc_forward.10} parent=5 // pred_region
        %s272 = ssub.s32 %s17, 1
        // Predicated region
        $region13: #{transformer_ctc_forward.10} parent=11 // pred_check
          %p273 = pneg %p164
        $region14: #{transformer_ctc_forward.10} parent=11 // pred_check_branch
          %275 = sbr.rel (%p273) target = $region16
        $region15: #{transformer_ctc_forward.10} parent=11 // pred_region
          _
        $region16: #{transformer_ctc_forward.10} parent=11 // pred_fallthru
          _
        // Predicated region
        $region17: #{transformer_ctc_forward.10} parent=11 // pred_check
          %p276 = pneg %p211
        $region18: #{transformer_ctc_forward.10} parent=11 // pred_check_branch
          %278 = sbr.rel (%p276) target = $region20
        $region19: #{transformer_ctc_forward.10} parent=11 // pred_region
          _
        $region20: #{transformer_ctc_forward.10} parent=11 // pred_fallthru
          _
        // Predicated region
        $region21: #{transformer_ctc_forward.10} parent=11 // pred_check
          %p279 = pneg %p232
        $region22: #{transformer_ctc_forward.10} parent=11 // pred_check_branch
          %281 = sbr.rel (%p279) target = $region24
        $region23: #{transformer_ctc_forward.10} parent=11 // pred_region
          _
        $region24: #{transformer_ctc_forward.10} parent=11 // pred_fallthru
          _
      $region12: #{transformer_ctc_forward.10} parent=5 // pred_fallthru
        _
      %p282 = scmp.lt.s32.totalorder %s17, 8
      // Predicated region
      $region25: #{transformer_ctc_forward.10} parent=5 // pred_check
        %p283 = pneg %p282
      $region26: #{transformer_ctc_forward.10} parent=5 // pred_check_branch
        %285 = sbr.rel (%p283) target = $region28
      $region27: #{transformer_ctc_forward.10} parent=5 // pred_region
        // Predicated region
        $region29: #{transformer_ctc_forward.10} parent=27 // pred_check
          %p286 = pneg %p51
        $region30: #{transformer_ctc_forward.10} parent=27 // pred_check_branch
          %288 = sbr.rel (%p286) target = $region32
        $region31: #{transformer_ctc_forward.10} parent=27 // pred_region
          %p289 = scmp.lt.s32.totalorder %s24, 1
          %s290 = scalar_select %p289, %s24, 1
          %p291 = scmp.lt.s32.totalorder %s25, 11
          %s292 = scalar_select %p291, %s25, 11
          %s293 = smul.addr %s290, 12
          %s294 = sadd.s32 %s292, %s293
          %s295 = smul.addr %s294, 8
          %s296 = scalar_lea.vmem %s0, %s295
        $region32: #{transformer_ctc_forward.10} parent=27 // pred_fallthru
          _
        // Predicated region
        $region33: #{transformer_ctc_forward.10} parent=27 // pred_check
          %p297 = pneg %p81
        $region34: #{transformer_ctc_forward.10} parent=27 // pred_check_branch
          %299 = sbr.rel (%p297) target = $region36
        $region35: #{transformer_ctc_forward.10} parent=27 // pred_region
          %s300 = sadd.s32 %s25, 4
          %p301 = scmp.lt.s32.totalorder %s24, 1
          %s302 = scalar_select %p301, %s24, 1
          %p303 = scmp.lt.s32.totalorder %s300, 11
          %s304 = scalar_select %p303, %s300, 11
          %s305 = smul.addr %s302, 12
          %s306 = sadd.s32 %s304, %s305
          %s307 = smul.addr %s306, 8
          %s308 = scalar_lea.vmem %s1, %s307
          %s309 = sadd.s32 %s25, 4
        $region36: #{transformer_ctc_forward.10} parent=27 // pred_fallthru
          _
        // Predicated region
        $region37: #{transformer_ctc_forward.10} parent=27 // pred_check
          %p310 = pneg %p111
        $region38: #{transformer_ctc_forward.10} parent=27 // pred_check_branch
          %312 = sbr.rel (%p310) target = $region40
        $region39: #{transformer_ctc_forward.10} parent=27 // pred_region
          %s313 = sadd.s32 %s25, 8
          %p314 = scmp.lt.s32.totalorder %s24, 1
          %s315 = scalar_select %p314, %s24, 1
          %p316 = scmp.lt.s32.totalorder %s313, 11
          %s317 = scalar_select %p316, %s313, 11
          %s318 = smul.addr %s315, 12
          %s319 = sadd.s32 %s317, %s318
          %s320 = smul.addr %s319, 8
          %s321 = scalar_lea.vmem %s2, %s320
          %s322 = sadd.s32 %s25, 8
        $region40: #{transformer_ctc_forward.10} parent=27 // pred_fallthru
          _
        // Predicated region
        $region41: #{transformer_ctc_forward.10} parent=27 // pred_check
          %p323 = pneg %p137
        $region42: #{transformer_ctc_forward.10} parent=27 // pred_check_branch
          %325 = sbr.rel (%p323) target = $region44
        $region43: #{transformer_ctc_forward.10} parent=27 // pred_region
          %s326 = sand.u32 %s127, 1
          %s327 = scalar_lea.sflag [#allocation4], %s326
          %s328 = sand.u32 %s127, 1
          %s329 = smul.addr %s328, 128
          %s330 = scalar_lea.vmem [#allocation3], %s329
          %s331 = smul.u32 16, %s25
          %333 = vsyncadd %s327, 0
          %s334 = smul.addr %s331, 8
          %s335 = scalar_lea.hbm %s3, %s334
          %s336 = sshll.u32 %s335, 4
          %s337 = int_to_ptr.hbm [resolvable:$true] %s336
          %s338 = sshll.u32 %s330, 4
          %s339 = int_to_ptr.vmem [resolvable:$true] %s338
          %344 = dma.hbm_to_vmem [thread:$0]  %s337, 2048, %s339, %s327, 128, 128, 8
        $region44: #{transformer_ctc_forward.10} parent=27 // pred_fallthru
          _
        // Predicated region
        $region45: #{transformer_ctc_forward.10} parent=27 // pred_check
          %p345 = pneg %p184
        $region46: #{transformer_ctc_forward.10} parent=27 // pred_check_branch
          %347 = sbr.rel (%p345) target = $region48
        $region47: #{transformer_ctc_forward.10} parent=27 // pred_region
          %p348 = scmp.lt.s32.totalorder %s24, 1
          %s349 = scalar_select %p348, %s24, 1
          %s350 = smul.addr %s349, 8
          %s351 = scalar_lea.vmem %s5, %s350
        $region48: #{transformer_ctc_forward.10} parent=27 // pred_fallthru
          _
      $region28: #{transformer_ctc_forward.10} parent=5 // pred_fallthru
        _
      %p352 = scmp.le.s32.totalorder 1, %s17
      %p353 = scmp.lt.s32.totalorder %s17, 9
      %p354 = pnand %p352, %p353
      %p355 = pneg %p354
      // Predicated region
      $region49: #{transformer_ctc_forward.10} parent=5 // pred_check
        _
      $region50: #{transformer_ctc_forward.10} parent=5 // pred_check_branch
        %357 = sbr.rel (%p354) target = $region52
      $region51: #{transformer_ctc_forward.10} parent=5 // pred_region
        %s358 = ssub.s32 %s17, 1
        %s359 = sand.u32 %s130, 1
        %s360 = scalar_lea.sflag [#allocation4], %s359
        %s361 = sand.u32 %s130, 1
        %s362 = smul.addr %s361, 128
        %s363 = scalar_lea.vmem [#allocation3], %s362
        // Predicated region
        $region53: #{transformer_ctc_forward.10} parent=51 // pred_check
          %p364 = pneg %p143
        $region54: #{transformer_ctc_forward.10} parent=51 // pred_check_branch
          %366 = sbr.rel (%p364) target = $region56
        $region55: #{transformer_ctc_forward.10} parent=51 // pred_region
          %368 = dma.done %s360, 2048
        $region56: #{transformer_ctc_forward.10} parent=51 // pred_fallthru
          _
        %p369 = scmp.lt.s32.totalorder %s26, 1
        %s370 = scalar_select %p369, %s26, 1
        %p371 = scmp.lt.s32.totalorder %s27, 11
        %s372 = scalar_select %p371, %s27, 11
        %s373 = smul.addr %s370, 12
        %s374 = sadd.s32 %s372, %s373
        %s375 = smul.addr %s374, 8
        %s376 = scalar_lea.vmem %s0, %s375
        %p377 = pneg %p57
        %p378 = pneg %p54
        %s379 = sadd.s32 %s27, 4
        %p380 = scmp.lt.s32.totalorder %s26, 1
        %s381 = scalar_select %p380, %s26, 1
        %p382 = scmp.lt.s32.totalorder %s379, 11
        %s383 = scalar_select %p382, %s379, 11
        %s384 = smul.addr %s381, 12
        %s385 = sadd.s32 %s383, %s384
        %s386 = smul.addr %s385, 8
        %s387 = scalar_lea.vmem %s1, %s386
        %p388 = pneg %p87
        %p389 = pneg %p84
        %s390 = sadd.s32 %s27, 8
        %p391 = scmp.lt.s32.totalorder %s26, 1
        %s392 = scalar_select %p391, %s26, 1
        %p393 = scmp.lt.s32.totalorder %s390, 11
        %s394 = scalar_select %p393, %s390, 11
        %s395 = smul.addr %s392, 12
        %s396 = sadd.s32 %s394, %s395
        %s397 = smul.addr %s396, 8
        %s398 = scalar_lea.vmem %s2, %s397
        %p399 = pneg %p117
        %p400 = pneg %p114
        %s401 = sand.u32 %s130, 1
        %s402 = scalar_lea.sflag [#allocation4], %s401
        %s403 = sand.u32 %s130, 1
        %s404 = smul.addr %s403, 128
        %s405 = scalar_lea.vmem [#allocation3], %s404
        %p406 = pneg %p143
        %p407 = pneg %p140
        %p408 = pneg %p164
        %p409 = pneg %p161
        %p410 = scmp.lt.s32.totalorder %s26, 1
        %s411 = scalar_select %p410, %s26, 1
        %s412 = smul.addr %s411, 8
        %s413 = scalar_lea.vmem %s5, %s412
        %p414 = pneg %p190
        %p415 = pneg %p187
        %p416 = pneg %p211
        %p417 = pneg %p208
        %p418 = pneg %p232
        %p419 = pneg %p229
        %p420 = pneg %p258
        %p421 = pneg %p255
        %p422 = scmp.lt.s32.totalorder %s26, 1
        %s423 = scalar_select %p422, %s26, 1
        %s424 = smul.addr %s423, 8
        %s425 = scalar_lea.vmem %s8, %s424
        %p426 = scmp.lt.s32.totalorder %s26, 1
        %s427 = scalar_select %p426, %s26, 1
        %p428 = scmp.lt.s32.totalorder %s27, 11
        %s429 = scalar_select %p428, %s27, 11
        %s430 = smul.addr %s427, 12
        %s431 = sadd.s32 %s429, %s430
        %s432 = smul.addr %s431, 8
        %s433 = scalar_lea.vmem %s0, %s432
        %s434 = sadd.s32 %s27, 4
        %p435 = scmp.lt.s32.totalorder %s26, 1
        %s436 = scalar_select %p435, %s26, 1
        %p437 = scmp.lt.s32.totalorder %s434, 11
        %s438 = scalar_select %p437, %s434, 11
        %s439 = smul.addr %s436, 12
        %s440 = sadd.s32 %s438, %s439
        %s441 = smul.addr %s440, 8
        %s442 = scalar_lea.vmem %s1, %s441
        %s443 = sadd.s32 %s27, 4
        %s444 = sadd.s32 %s27, 8
        %p445 = scmp.lt.s32.totalorder %s26, 1
        %s446 = scalar_select %p445, %s26, 1
        %p447 = scmp.lt.s32.totalorder %s444, 11
        %s448 = scalar_select %p447, %s444, 11
        %s449 = smul.addr %s446, 12
        %s450 = sadd.s32 %s448, %s449
        %s451 = smul.addr %s450, 8
        %s452 = scalar_lea.vmem %s2, %s451
        %s453 = sadd.s32 %s27, 8
        %s454 = smul.u32 16, %s27
        %p455 = scmp.lt.s32.totalorder %s26, 1
        %s456 = scalar_select %p455, %s26, 1
        %s457 = smul.addr %s456, 8
        %s458 = scalar_lea.vmem %s5, %s457
        %p459 = scmp.lt.s32.totalorder %s26, 1
        %s460 = scalar_select %p459, %s26, 1
        %s461 = smul.addr %s460, 8
        %s462 = scalar_lea.vmem %s8, %s461
        %p463 = scmp.eq.s32.totalorder %s27, 0
        // Predicated region
        $region57: #{transformer_ctc_forward.10} parent=51 // pred_check
          %p464 = pneg %p463
        $region58: #{transformer_ctc_forward.10} parent=51 // pred_check_branch
          %466 = sbr.rel (%p464) target = $region60
        $region59: #{transformer_ctc_forward.10} parent=51 // pred_region
          %467 = vst [vmem:[#allocation2] sm:$0xff] 0.0
        $region60: #{transformer_ctc_forward.10} parent=51 // pred_fallthru
          _
        %v468 = vld [vmem:[%s433] sm:$0xff]
        %v469 = vmul.f32 %v468, 0.35355338
        %v470 = vld [vmem:[%s442] sm:$0xff]
        %471 = vmatpush.xpose.msra.mxu0 0.0
        %472 = vmatpush.xpose.msra.mxu0 0.0
        %473 = vmatpush.xpose.msra.mxu0 0.0
        %474 = vmatpush.xpose.msra.mxu0 0.0
        %475 = vmatpush.xpose.msra.mxu0 0.0
        %476 = vmatpush.xpose.msra.mxu0 0.0
        %477 = vmatpush.xpose.msra.mxu0 0.0
        %478 = vmatpush.xpose.msra.mxu0 0.0
        %479 = vmatpush.xpose.msra.mxu0 0.0
        %480 = vmatpush.xpose.msra.mxu0 0.0
        %481 = vmatpush.xpose.msra.mxu0 0.0
        %482 = vmatpush.xpose.msra.mxu0 0.0
        %483 = vmatpush.xpose.msra.mxu0 0.0
        %484 = vmatpush.xpose.msra.mxu0 0.0
        %485 = vmatpush.xpose.msra.mxu0 0.0
        %486 = vmatpush.xpose.msra.mxu0 %v470
        %487 = vmatmul.f32.gmra.mxu0 %v469
        %v488 = vpop.f32.mrf.mxu0
        %v489 = vadd.f32 0.0, %v488
        %490 = vdwg.mxu0
        %vm491 = vcmask 64512
        %v492 = vsel %vm491, %v489, -inf
        %493 = vmax.xlane.f32.xlu0 %v492
        %v494 = vpop.xlane.xlu0 %493
        %v495 = vsub.f32 %v489, %v494
        %v496 = vmul.f32 %v495, 1.442695
        %v497 = vpow.pop %v496
        %v498 = vsel %vm491, %v497, 0.0
        %499 = vadd.xlane.f32.xlu0 %v498
        %v500 = vpop.xlane.xlu0 %499
        %v501 = vrcp.pop %v500
        %v502 = vmul.f32 %v497, %v501
        %v503 = vld [vmem:[%s452] sm:$0xff]
        %v505 = vsel %vm491, %v502, 0
        %507 = vmatpush.msra.mxu0 0.0
        %508 = vmatpush.msra.mxu0 0.0
        %509 = vmatpush.msra.mxu0 0.0
        %510 = vmatpush.msra.mxu0 0.0
        %511 = vmatpush.msra.mxu0 0.0
        %512 = vmatpush.msra.mxu0 0.0
        %513 = vmatpush.msra.mxu0 0.0
        %514 = vmatpush.msra.mxu0 0.0
        %515 = vmatpush.msra.mxu0 0.0
        %516 = vmatpush.msra.mxu0 0.0
        %517 = vmatpush.msra.mxu0 0.0
        %518 = vmatpush.msra.mxu0 0.0
        %519 = vmatpush.msra.mxu0 0.0
        %520 = vmatpush.msra.mxu0 0.0
        %521 = vmatpush.msra.mxu0 0.0
        %522 = vmatpush.msra.mxu0 %v503
        %523 = vmatmul.f32.gmra.mxu0 %v505
        %v524 = vpop.f32.mrf.mxu0
        %v525 = vadd.f32 0.0, %v524
        %526 = vdwg.mxu0
        %v527 = vld [vmem:[#allocation2] sm:$0xff]
        %v528 = vld [vmem:[%s363] sm:$0xff]
        %v529 = vld [vmem:[%s363 + $0x8] sm:$0xff]
        %v530 = vld [vmem:[%s363 + $0x10] sm:$0xff]
        %v531 = vld [vmem:[%s363 + $0x18] sm:$0xff]
        %v532 = vld [vmem:[%s363 + $0x20] sm:$0xff]
        %v533 = vld [vmem:[%s363 + $0x28] sm:$0xff]
        %v534 = vld [vmem:[%s363 + $0x30] sm:$0xff]
        %v535 = vld [vmem:[%s363 + $0x38] sm:$0xff]
        %v536 = vld [vmem:[%s363 + $0x40] sm:$0xff]
        %v537 = vld [vmem:[%s363 + $0x48] sm:$0xff]
        %v538 = vld [vmem:[%s363 + $0x50] sm:$0xff]
        %v539 = vld [vmem:[%s363 + $0x58] sm:$0xff]
        %v540 = vld [vmem:[%s363 + $0x60] sm:$0xff]
        %v541 = vld [vmem:[%s363 + $0x68] sm:$0xff]
        %v542 = vld [vmem:[%s363 + $0x70] sm:$0xff]
        %v543 = vld [vmem:[%s363 + $0x78] sm:$0xff]
        %544 = vmatpush.msra.mxu0 %v543
        %545 = vmatpush.msra.mxu0 %v542
        %546 = vmatpush.msra.mxu0 %v541
        %547 = vmatpush.msra.mxu0 %v540
        %548 = vmatpush.msra.mxu0 %v539
        %549 = vmatpush.msra.mxu0 %v538
        %550 = vmatpush.msra.mxu0 %v537
        %551 = vmatpush.msra.mxu0 %v536
        %552 = vmatpush.msra.mxu0 %v535
        %553 = vmatpush.msra.mxu0 %v534
        %554 = vmatpush.msra.mxu0 %v533
        %555 = vmatpush.msra.mxu0 %v532
        %556 = vmatpush.msra.mxu0 %v531
        %557 = vmatpush.msra.mxu0 %v530
        %558 = vmatpush.msra.mxu0 %v529
        %559 = vmatpush.msra.mxu0 %v528
        %560 = vmatmul.f32.gmra.mxu0 %v525
        %v561 = vpop.f32.mrf.mxu0
        %v562 = vadd.f32 0.0, %v561
        %563 = vdwg.mxu0
        %v564 = vadd.f32 %v527, %v562
        %565 = vst [vmem:[#allocation2] sm:$0xff] %v564
        %p566 = scmp.eq.s32.totalorder %s27, 3
        // Predicated region
        $region61: #{transformer_ctc_forward.10} parent=51 // pred_check
          %p567 = pneg %p566
        $region62: #{transformer_ctc_forward.10} parent=51 // pred_check_branch
          %569 = sbr.rel (%p567) target = $region64
        $region63: #{transformer_ctc_forward.10} parent=51 // pred_region
          %v570 = vld [vmem:[#allocation2] sm:$0xff]
          %v571 = vld [vmem:[%s4] sm:$0x1]
          %v573 = vperm.slane %v571, 0
          %v575 = vadd.f32 %v570, %v573
          %v576 = vld [vmem:[%s458] sm:$0xff]
          %v577 = vadd.f32 %v575, %v576
          %v578 = vld [vmem:[%s6] sm:$0x1]
          %v579 = vld [vmem:[%s7] sm:$0x1]
          %v580 = vlaneseq
          %v581 = vand.u32 %v580, 127
          %vm582 = vcmp.lt.s32.totalorder %v581, 32
          %v583 = vsel %vm582, 1, 0
          %vm584 = vcmp.eq.s32.totalorder %v583, 1
          %v585 = vsel %vm584, %v577, 0.0
          %586 = vadd.xlane.f32.xlu0 %v585
          %v587 = vpop.xlane.xlu0 %586
          %v588 = vmul.f32 %v587, 0.03125
          %v589 = vsub.f32 %v577, %v588
          %v590 = vsel %vm584, %v589, 0.0
          %v591 = vmul.f32 %v590, %v590
          %592 = vadd.xlane.f32.xlu0 %v591
          %v593 = vpop.xlane.xlu0 %592
          %v594 = vmul.f32 %v593, 0.03125
          %v595 = vadd.f32 %v594, 1e-05
          %v596 = vrsqrt.pop %v595
          %v597 = vmul.f32 %v596, %v595
          %v598 = vmul.f32 %v597, %v596
          %v599 = vmul.f32 0.5, %v598
          %v600 = vsub.f32 1.5, %v599
          %v601 = vmul.f32 %v596, %v600
          %vm602 = vweird.f32 %v595
          %vm603 = vweird.f32 %v596
          %vm604 = vmor %vm602, %vm603
          %v605 = vsel %vm604, %v596, %v601
          %v606 = vmul.f32 %v589, %v605
          %v608 = vperm.slane %v578, 0
          %v610 = vmul.f32 %v606, %v608
          %v612 = vperm.slane %v579, 0
          %v614 = vadd.f32 %v610, %v612
          %615 = vst [vmem:[%s462] sm:$0xff] %v614
        $region64: #{transformer_ctc_forward.10} parent=51 // pred_fallthru
          _
        %p616 = scmp.lt.s32.totalorder %s26, 1
        %s617 = scalar_select %p616, %s26, 1
        %s618 = smul.addr %s617, 8
        %s619 = scalar_lea.vmem %s8, %s618
        // Predicated region
        $region65: #{transformer_ctc_forward.10} parent=51 // pred_check
          %p620 = pneg %p255
        $region66: #{transformer_ctc_forward.10} parent=51 // pred_check_branch
          %622 = sbr.rel (%p620) target = $region68
        $region67: #{transformer_ctc_forward.10} parent=51 // pred_region
          _
        $region68: #{transformer_ctc_forward.10} parent=51 // pred_fallthru
          _
      $region52: #{transformer_ctc_forward.10} parent=5 // pred_fallthru
        _
      %p623 = scmp.le.s32.totalorder 2, %s17
      // Predicated region
      $region69: #{transformer_ctc_forward.10} parent=5 // pred_check
        %p624 = pneg %p623
      $region70: #{transformer_ctc_forward.10} parent=5 // pred_check_branch
        %626 = sbr.rel (%p624) target = $region72
      $region71: #{transformer_ctc_forward.10} parent=5 // pred_region
        %s627 = ssub.s32 %s17, 2
        // Predicated region
        $region73: #{transformer_ctc_forward.10} parent=71 // pred_check
          %p628 = pneg %p261
        $region74: #{transformer_ctc_forward.10} parent=71 // pred_check_branch
          %630 = sbr.rel (%p628) target = $region76
        $region75: #{transformer_ctc_forward.10} parent=71 // pred_region
          %p631 = scmp.lt.s32.totalorder %s28, 1
          %s632 = scalar_select %p631, %s28, 1
          %s633 = smul.addr %s632, 8
          %s634 = scalar_lea.vmem %s8, %s633
        $region76: #{transformer_ctc_forward.10} parent=71 // pred_fallthru
          _
      $region72: #{transformer_ctc_forward.10} parent=5 // pred_fallthru
        _
    $region6: #{transformer_ctc_forward.10} parent=1 // loop_footer
      %s21 = sadd.s32 1, %s17
    $region7: #{transformer_ctc_forward.10} parent=1 // loop_footer_branch
      %16 = sbr.rel target = $region3
    $region8: #{transformer_ctc_forward.10} parent=1 // loop_exit
      _
    %635 = vsyncpa [#allocation4], 1
    %s636 = scalar_lea.sflag [#allocation4], 1
    %637 = vsyncpa %s636, 1

// kernel: transformer_ctc_forward.15
$region0: #{transformer_ctc_forward.15}
  #allocation0 [shape = 'u32[]', space=smem, size = 0x4, offset = 0x4, fixed_abs, tag = 'smem constant byte address 0x4 - core index']
  #allocation1 [shape = 'u32[72,128]{1,0:T(1,128)}', space=vmem, size = 0x9000, scoped, tag = 'internal scratch']
  #allocation2 [shape = 'f32[16,128]{1,0:T(8,128)}', space=vmem, size = 0x2000, scoped, tag = 'scratch operand']
  %s0 = inlined_call_operand.vmem [shape: f32[16,128], index: 0, kind: input, shape index: {}]
  %s1 = inlined_call_operand.hbm [shape: f32[128,128], index: 1, kind: input, shape index: {}]
  %s2 = inlined_call_operand.vmem [shape: f32[1,128], index: 2, kind: input, shape index: {}]
  %s3 = inlined_call_operand.hbm [shape: f32[16,128], index: 3, kind: output, shape index: {}]
  %s4 = sld [smem:[#allocation0]]
  $region34: #{transformer_ctc_forward.15} parent=0
    _
  %s6 = ssub.s32 1, %s4
  %s7 = scalar_select 0, %s6, %s4
  $region1: #{transformer_ctc_forward.15} parent=0
    #allocation3 [shape = 'u8[65536]{0}', space=vmem, size = 0x10000, scoped, tag = 'input window, operand 1, single buffered']
    #allocation4 [shape = 's32[1]{0}', space=sflag, size = 0x4, scoped, tag = 'scoped memory for transformer_ctc_forward.15']
    #allocation5 [shape = 's32[1]{0}', space=sflag, size = 0x4, scoped, tag = 'scoped memory for transformer_ctc_forward.15']
    #allocation6 [shape = 'u8[8192]{0}', space=vmem, size = 0x2000, scoped, tag = 'output window, operand 0, single buffered']
    %8 = vsyncpa [#allocation4], 0
    %9 = vsyncpa [#allocation5], 0
    // Predicated region
    $region2: #{transformer_ctc_forward.15} parent=1 // pred_check
      _
    $region3: #{transformer_ctc_forward.15} parent=1 // pred_check_branch
      %11 = sbr.rel (0) target = $region5
    $region4: #{transformer_ctc_forward.15} parent=1 // pred_region
      _
    $region5: #{transformer_ctc_forward.15} parent=1 // pred_fallthru
      _
    // Predicated region
    $region6: #{transformer_ctc_forward.15} parent=1 // pred_check
      _
    $region7: #{transformer_ctc_forward.15} parent=1 // pred_check_branch
      %13 = sbr.rel (0) target = $region9
    $region8: #{transformer_ctc_forward.15} parent=1 // pred_region
      %15 = vsyncadd [#allocation4], 0
      %s16 = sshll.u32 %s1, 4
      %s17 = int_to_ptr.hbm [resolvable:$true] %s16
      %s18 = sshll.u32 [#allocation3], 4
      %s19 = int_to_ptr.vmem [resolvable:$true] %s18
      %24 = dma.hbm_to_vmem [thread:$0]  %s17, 2048, %s19, [#allocation4], 128, 128, 8
    $region9: #{transformer_ctc_forward.15} parent=1 // pred_fallthru
      _
    // Predicated region
    $region10: #{transformer_ctc_forward.15} parent=1 // pred_check
      _
    $region11: #{transformer_ctc_forward.15} parent=1 // pred_check_branch
      %26 = sbr.rel (0) target = $region13
    $region12: #{transformer_ctc_forward.15} parent=1 // pred_region
      _
    $region13: #{transformer_ctc_forward.15} parent=1 // pred_fallthru
      _
    // Predicated region
    $region14: #{transformer_ctc_forward.15} parent=1 // pred_check
      _
    $region15: #{transformer_ctc_forward.15} parent=1 // pred_check_branch
      %28 = sbr.rel (0) target = $region17
    $region16: #{transformer_ctc_forward.15} parent=1 // pred_region
      %30 = dma.done [#allocation4], 2048
    $region17: #{transformer_ctc_forward.15} parent=1 // pred_fallthru
      _
    %p31 = scmp.eq.s32.totalorder 0, 0
    // Predicated region
    $region18: #{transformer_ctc_forward.15} parent=1 // pred_check
      %p32 = pneg %p31
    $region19: #{transformer_ctc_forward.15} parent=1 // pred_check_branch
      %34 = sbr.rel (%p32) target = $region21
    $region20: #{transformer_ctc_forward.15} parent=1 // pred_region
      %35 = vst [vmem:[#allocation2] sm:$0xff] 0.0
      %36 = vst [vmem:[#allocation2 + $0x8] sm:$0xff] 0.0
    $region21: #{transformer_ctc_forward.15} parent=1 // pred_fallthru
      _
    %v37 = vld [vmem:[#allocation2] sm:$0xff]
    %v38 = vld [vmem:[#allocation2 + $0x8] sm:$0xff]
    %v39 = vld [vmem:[%s0] sm:$0xff]
    %v40 = vld [vmem:[%s0 + $0x8] sm:$0xff]
    %v41 = vld [vmem:[#allocation3] sm:$0xff]
    %v42 = vld [vmem:[#allocation3 + $0x8] sm:$0xff]
    %v43 = vld [vmem:[#allocation3 + $0x10] sm:$0xff]
    %v44 = vld [vmem:[#allocation3 + $0x18] sm:$0xff]
    %v45 = vld [vmem:[#allocation3 + $0x20] sm:$0xff]
    %v46 = vld [vmem:[#allocation3 + $0x28] sm:$0xff]
    %v47 = vld [vmem:[#allocation3 + $0x30] sm:$0xff]
    %v48 = vld [vmem:[#allocation3 + $0x38] sm:$0xff]
    %v49 = vld [vmem:[#allocation3 + $0x40] sm:$0xff]
    %v50 = vld [vmem:[#allocation3 + $0x48] sm:$0xff]
    %v51 = vld [vmem:[#allocation3 + $0x50] sm:$0xff]
    %v52 = vld [vmem:[#allocation3 + $0x58] sm:$0xff]
    %v53 = vld [vmem:[#allocation3 + $0x60] sm:$0xff]
    %v54 = vld [vmem:[#allocation3 + $0x68] sm:$0xff]
    %v55 = vld [vmem:[#allocation3 + $0x70] sm:$0xff]
    %v56 = vld [vmem:[#allocation3 + $0x78] sm:$0xff]
    %57 = vmatpush.msra.mxu0 %v56
    %58 = vmatpush.msra.mxu0 %v55
    %59 = vmatpush.msra.mxu0 %v54
    %60 = vmatpush.msra.mxu0 %v53
    %61 = vmatpush.msra.mxu0 %v52
    %62 = vmatpush.msra.mxu0 %v51
    %63 = vmatpush.msra.mxu0 %v50
    %64 = vmatpush.msra.mxu0 %v49
    %65 = vmatpush.msra.mxu0 %v48
    %66 = vmatpush.msra.mxu0 %v47
    %67 = vmatpush.msra.mxu0 %v46
    %68 = vmatpush.msra.mxu0 %v45
    %69 = vmatpush.msra.mxu0 %v44
    %70 = vmatpush.msra.mxu0 %v43
    %71 = vmatpush.msra.mxu0 %v42
    %72 = vmatpush.msra.mxu0 %v41
    %73 = vmatmul.f32.gmra.mxu0 %v39
    %v74 = vpop.f32.mrf.mxu0
    %v75 = vadd.f32 0.0, %v74
    %76 = vmatmul.f32.gmra.mxu0 %v40
    %v77 = vpop.f32.mrf.mxu0
    %v78 = vadd.f32 0.0, %v77
    %79 = vdwg.mxu0
    %v80 = vadd.f32 %v37, %v75
    %v81 = vadd.f32 %v38, %v78
    %82 = vst [vmem:[#allocation2] sm:$0xff] %v80
    %83 = vst [vmem:[#allocation2 + $0x8] sm:$0xff] %v81
    // Predicated region
    $region22: #{transformer_ctc_forward.15} parent=1 // pred_check
      %p84 = pneg %p31
    $region23: #{transformer_ctc_forward.15} parent=1 // pred_check_branch
      %86 = sbr.rel (%p84) target = $region25
    $region24: #{transformer_ctc_forward.15} parent=1 // pred_region
      %v87 = vld [vmem:[#allocation2] sm:$0xff]
      %v88 = vld [vmem:[#allocation2 + $0x8] sm:$0xff]
      %v89 = vld [vmem:[%s2] sm:$0x1]
      %v91 = vperm.slane %v89, 0
      %v93 = vadd.f32 %v87, %v91
      %v94 = vadd.f32 %v88, %v91
      %95 = vst [vmem:[#allocation6] sm:$0xff] %v93
      %96 = vst [vmem:[#allocation6 + $0x8] sm:$0xff] %v94
    $region25: #{transformer_ctc_forward.15} parent=1 // pred_fallthru
      _
    // Predicated region
    $region26: #{transformer_ctc_forward.15} parent=1 // pred_check
      _
    $region27: #{transformer_ctc_forward.15} parent=1 // pred_check_branch
      %98 = sbr.rel (0) target = $region29
    $region28: #{transformer_ctc_forward.15} parent=1 // pred_region
      %100 = vsyncadd [#allocation5], 0
      %s101 = sshll.u32 [#allocation6], 4
      %s102 = int_to_ptr.vmem [resolvable:$true] %s101
      %s103 = sshll.u32 %s3, 4
      %s104 = int_to_ptr.hbm [resolvable:$true] %s103
      %109 = dma.vmem_to_hbm [thread:$0]  %s102, 256, %s104, [#allocation5], 128, 128, 8
    $region29: #{transformer_ctc_forward.15} parent=1 // pred_fallthru
      _
    // Predicated region
    $region30: #{transformer_ctc_forward.15} parent=1 // pred_check
      _
    $region31: #{transformer_ctc_forward.15} parent=1 // pred_check_branch
      %111 = sbr.rel (0) target = $region33
    $region32: #{transformer_ctc_forward.15} parent=1 // pred_region
      %113 = dma.done [#allocation5], 256
    $region33: #{transformer_ctc_forward.15} parent=1 // pred_fallthru
      _
    %114 = vsyncpa [#allocation4], 1
    %115 = vsyncpa [#allocation5], 1

</llo_original>
